<compile_context>
chip_gen: v5e
topology: v5e:2x2
jax: 0.10.0
libtpu: 0.0.40
codegen_flags: <defaults>
</compile_context>

<pallas_src>
import functools

import jax
import jax.numpy as jnp
import numpy as np
from jax import lax
from jax.experimental import pallas as pl
from jax.experimental.pallas import tpu as pltpu

KERNEL_SIZE = 15
PADDING = 7
EPS = 1e-5
NEG_SLOPE = 0.01

_LANE = 128
_SUBLANE = 8


def _round_up(v, m):
    return (v + m - 1) // m * m


def _tpu_settings():
    """Returns (max L-tile, vmem_limit_bytes) per TPU generation."""
    try:
        kind = jax.devices()[0].device_kind.lower()
    except Exception:
        kind = ""
    if any(f"v{g}" in kind for g in (2, 3, 4, 5, 6)):
        # 128 MiB VMEM per core: big tiles amortize per-grid-step overhead.
        return 1024, 96 * 1024 * 1024
    # v7x (64 MiB / TensorCore) and unknown devices: conservative settings.
    return 512, 48 * 1024 * 1024


# ---------------------------------------------------------------------------
# Shared conv tile: Conv1d over one lane tile, returns (C_out_p, T) f32.
# ---------------------------------------------------------------------------
def _conv_tile(x_ref, strip_ref, w_ref, C_in_p):
    x_t = x_ref[0]                      # (C_in_p, T)          bf16, aligned tile
    st = strip_ref[0, 0]                # (C_in_p, 2*PADDING)  bf16, right strip
    win = jnp.concatenate([x_t, st], axis=1)          # (C_in_p, T + 2P)
    T = x_t.shape[1]
    if C_in_p >= 128:
        # Contraction over C_in_p is already MXU-deep: K accumulating dots on
        # shifted views, skipping the K*C_in_p*T im2col slab entirely.
        acc = jnp.zeros((w_ref.shape[0], T), jnp.float32)
        for k in range(KERNEL_SIZE):
            acc = acc + jnp.dot(
                w_ref[:, k * C_in_p:(k + 1) * C_in_p], win[:, k:k + T],
                preferred_element_type=jnp.float32)
        return acc
    # Small C_in: fuse all 15 taps into ONE MXU dot (contraction K*C_in_p).
    slab = jnp.concatenate(
        [win[:, k:k + T] for k in range(KERNEL_SIZE)], axis=0)  # (K*C_in_p, T)
    return jnp.dot(w_ref[...], slab, preferred_element_type=jnp.float32)


# ---------------------------------------------------------------------------
# Pass 1: batch statistics only (per-n sum / sumsq accumulated across L tiles).
# ---------------------------------------------------------------------------
def _stats_kernel(x_ref, strip_ref, w_ref, ssum_ref, ssq_ref, *,
                  C_in_p, valid_len):
    l = pl.program_id(1)

    @pl.when(l == 0)
    def _():
        ssum_ref[...] = jnp.zeros_like(ssum_ref)
        ssq_ref[...] = jnp.zeros_like(ssq_ref)

    y = _conv_tile(x_ref, strip_ref, w_ref, C_in_p)     # (C_out_p, T) f32
    T = y.shape[1]
    col = l * T + lax.broadcasted_iota(jnp.int32, (1, T), 1)
    y = jnp.where(col < valid_len, y, 0.0)              # drop padded lanes
    # TODO(synk): f32 sum/sumsq can cancel for very long sequences with
    # |mean| >> std; a mean-shifted (Welford-style) combine would be sturdier.
    ssum_ref[0] += jnp.sum(y, axis=1, keepdims=True)
    ssq_ref[0] += jnp.sum(y * y, axis=1, keepdims=True)


# ---------------------------------------------------------------------------
# Pass 2: recompute conv, apply folded BN affine + LeakyReLU, write final
#         unpadded output directly (ragged edge tile masked by Pallas).
# ---------------------------------------------------------------------------
def _conv_bn_act_kernel(x_ref, strip_ref, w_ref, scale_ref, shift_ref, o_ref, *,
                        C_in_p, C_out):
    y = _conv_tile(x_ref, strip_ref, w_ref, C_in_p)     # (C_out_p, T) f32
    z = y * scale_ref[...] + shift_ref[...]
    z = jnp.where(z >= 0, z, NEG_SLOPE * z)
    o_ref[0] = z[:C_out, :]


@functools.partial(jax.jit, static_argnames=("l_tile",))
def downsampling_layer(x, w, gamma, beta, *, l_tile=None):
    """x: (N, C_in, L) f32; w: (C_out, C_in, K) f32; gamma/beta: (C_out,) f32.

    The Conv1d bias is not an input: training-mode BatchNorm subtracts the
    batch mean, which contains the bias exactly, so it cancels identically.
    """
    N, C_in, L = x.shape
    C_out = w.shape[0]

    t_cap, vmem_limit = _tpu_settings()
    if l_tile is not None:
        t_cap = l_tile
    C_in_p = _round_up(C_in, 16)                 # bf16 sublane packing
    C_out_p = _round_up(C_out, _SUBLANE)
    T = min(_round_up(L, _LANE), _round_up(t_cap, _LANE))
    num_tiles = (L + T - 1) // T
    L_pad = num_tiles * T
    L_ext = L_pad + T                            # room for the strip reshape

    # ---- one-time layout glue: single pad+cast pass over x; tiny extras ----
    x_ext = jnp.pad(
        x, ((0, 0), (0, C_in_p - C_in), (PADDING, L_ext - L - PADDING)),
    ).astype(jnp.bfloat16)                       # (N, C_in_p, L_ext)
    # Right-boundary strip: strip[n, l] = x_ext[n, :, (l+1)*T : (l+1)*T + 2P].
    strip = x_ext[:, :, T:].reshape(N, C_in_p, num_tiles, T)[:, :, :, :2 * PADDING]
    strip = jnp.transpose(strip, (0, 2, 1, 3))   # (N, num_tiles, C_in_p, 2P)

    w_p = jnp.pad(w, ((0, C_out_p - C_out), (0, C_in_p - C_in), (0, 0)))
    w2 = jnp.transpose(w_p, (0, 2, 1)).reshape(C_out_p, KERNEL_SIZE * C_in_p)
    w2 = w2.astype(jnp.bfloat16)                 # w2[o, k*C_in_p + c] = w[o, c, k]

    x_spec = pl.BlockSpec((1, C_in_p, T), lambda n, l: (n, 0, l))
    strip_spec = pl.BlockSpec((1, 1, C_in_p, 2 * PADDING),
                              lambda n, l: (n, l, 0, 0))
    w_spec = pl.BlockSpec((C_out_p, KERNEL_SIZE * C_in_p), lambda n, l: (0, 0))

    flops = 2 * N * L_pad * C_out_p * KERNEL_SIZE * C_in_p
    in_bytes = x_ext.size * 2 + strip.size * 2 + w2.size * 2

    # ---- pass 1: batch statistics (no conv intermediate written to HBM) ----
    ssum, ssq = pl.pallas_call(
        functools.partial(_stats_kernel, C_in_p=C_in_p, valid_len=L),
        out_shape=(jax.ShapeDtypeStruct((N, C_out_p, 1), jnp.float32),
                   jax.ShapeDtypeStruct((N, C_out_p, 1), jnp.float32)),
        grid=(N, num_tiles),
        in_specs=[x_spec, strip_spec, w_spec],
        out_specs=(pl.BlockSpec((1, C_out_p, 1), lambda n, l: (n, 0, 0)),
                   pl.BlockSpec((1, C_out_p, 1), lambda n, l: (n, 0, 0))),
        compiler_params=pltpu.CompilerParams(
            dimension_semantics=("parallel", "arbitrary"),
            vmem_limit_bytes=vmem_limit),
        cost_estimate=pl.CostEstimate(
            flops=flops, transcendentals=0,
            bytes_accessed=in_bytes + 2 * N * C_out_p * 4),
    )(x_ext, strip, w2)

    # ---- tiny per-channel BN coefficient folding (XLA glue) ----
    count = jnp.float32(N * L)                   # true (unpadded) count
    mean = jnp.sum(ssum[:, :, 0], axis=0) / count
    var = jnp.maximum(jnp.sum(ssq[:, :, 0], axis=0) / count - mean * mean, 0.0)
    inv_std = lax.rsqrt(var + EPS)
    gamma_p = jnp.pad(gamma, (0, C_out_p - C_out))
    beta_p = jnp.pad(beta, (0, C_out_p - C_out))
    scale = (gamma_p * inv_std).reshape(C_out_p, 1)
    shift = (beta_p - mean * gamma_p * inv_std).reshape(C_out_p, 1)

    # ---- pass 2: recompute conv + BN affine + LeakyReLU, fused unpad ----
    out = pl.pallas_call(
        functools.partial(_conv_bn_act_kernel, C_in_p=C_in_p, C_out=C_out),
        out_shape=jax.ShapeDtypeStruct((N, C_out, L), jnp.float32),
        grid=(N, num_tiles),
        in_specs=[x_spec, strip_spec, w_spec,
                  pl.BlockSpec((C_out_p, 1), lambda n, l: (0, 0)),
                  pl.BlockSpec((C_out_p, 1), lambda n, l: (0, 0))],
        out_specs=pl.BlockSpec((1, C_out, T), lambda n, l: (n, 0, l)),
        compiler_params=pltpu.CompilerParams(
            dimension_semantics=("parallel", "parallel"),
            vmem_limit_bytes=vmem_limit),
        cost_estimate=pl.CostEstimate(
            flops=flops, transcendentals=0,
            bytes_accessed=in_bytes + N * C_out * L * 4),
    )(x_ext, strip, w2, scale, shift)

    return out


def reference_forward(x, w, b, gamma, beta):
    # Pure-JAX f32 reference: Conv1d (+bias) + training-mode BN + LeakyReLU.
    y = lax.conv_general_dilated(
        x, w, window_strides=(1,), padding=[(PADDING, PADDING)],
        dimension_numbers=("NCH", "OIH", "NCH"))
    y = y + b[None, :, None]
    mean = jnp.mean(y, axis=(0, 2), keepdims=True)
    var = jnp.mean((y - mean) ** 2, axis=(0, 2), keepdims=True)
    y_hat = (y - mean) / jnp.sqrt(var + EPS)
    y_bn = y_hat * gamma[None, :, None] + beta[None, :, None]
    return jnp.where(y_bn >= 0, y_bn, NEG_SLOPE * y_bn)


def _run_case(key, N, C_in, C_out, L, l_tile=None):
    kx, kw, kb = jax.random.split(key, 3)
    x = jax.random.normal(kx, (N, C_in, L), dtype=jnp.float32)
    bound = 1.0 / np.sqrt(C_in * KERNEL_SIZE)
    w = jax.random.uniform(kw, (C_out, C_in, KERNEL_SIZE), jnp.float32,
                           -bound, bound)
    b = jax.random.uniform(kb, (C_out,), jnp.float32, -bound, bound)
    gamma = jnp.ones((C_out,), jnp.float32)      # BatchNorm1d weight init
    beta = jnp.zeros((C_out,), jnp.float32)      # BatchNorm1d bias init

    # Conv bias b is NOT passed to the kernel (it cancels under training BN);
    # the reference uses it, demonstrating the equivalence.
    out = jax.block_until_ready(downsampling_layer(x, w, gamma, beta,
                                                   l_tile=l_tile))
    ref = reference_forward(x, w, b, gamma, beta)
    # bf16 MXU operands (f32 accumulation) => looser tolerance than pure f32.
    np.testing.assert_allclose(np.asarray(out), np.asarray(ref),
                               rtol=5e-2, atol=5e-2)


if __name__ == "__main__":
    key = jax.random.PRNGKey(0)
    k1, k2 = jax.random.split(key)

    # Small primary case consistent with the module forward: x is (N, C_in, L).
    _run_case(k1, N=2, C_in=4, C_out=8, L=16)

    # Multi-tile case: L not a multiple of T, num_tiles > 1, padded channels —
    # exercises the ragged-edge masking, stats accumulation and channel slice.
    _run_case(k2, N=2, C_in=3, C_out=12, L=300, l_tile=128)

    print("KERNEL_OK")
</pallas_src>

<mosaic_0001>
module attributes {stable_mosaic.version = 11 : i64} {
  func.func @_stats_kernel(%arg0: i32, %arg1: i32, %arg2: memref<1x16x128xbf16, #tpu.memory_space<vmem>>, %arg3: memref<1x1x16x14xbf16, #tpu.memory_space<vmem>>, %arg4: memref<8x240xbf16, #tpu.memory_space<vmem>>, %arg5: memref<1x8x1xf32, #tpu.memory_space<vmem>>, %arg6: memref<1x8x1xf32, #tpu.memory_space<vmem>>) attributes {dimension_semantics = [#tpu.dimension_semantics<parallel>, #tpu.dimension_semantics<arbitrary>], iteration_bounds = array<i64: 2, 1>, scalar_prefetch = 0 : i64, scratch_operands = 0 : i64, tpu.core_type = #tpu.core_type<tc>, window_params = [{transform_indices = @transform_0, window_bounds = array<i64: 1, 16, 128>}, {transform_indices = @transform_1, window_bounds = array<i64: 1, 1, 16, 14>}, {pipeline_mode = #tpu.pipeline_mode<synchronous>, transform_indices = @transform_2, window_bounds = array<i64: 8, 240>}, {transform_indices = @transform_3, window_bounds = array<i64: 1, 8, 1>}, {transform_indices = @transform_4, window_bounds = array<i64: 1, 8, 1>}]} {
    %c0_i32 = arith.constant 0 : i32
    %0 = arith.cmpi eq, %arg1, %c0_i32 : i32
    %1 = arith.extui %0 : i1 to i32
    %c0_i32_0 = arith.constant 0 : i32
    %2 = arith.cmpi ne, %1, %c0_i32_0 : i32
    scf.if %2 {
      %cst_24 = arith.constant 0.000000e+00 : f32
      %53 = vector.broadcast %cst_24 : f32 to vector<1x8x1xf32>
      %c0_25 = arith.constant 0 : index
      %c0_26 = arith.constant 0 : index
      %c0_27 = arith.constant 0 : index
      %54 = vector.load %arg5[%c0_25, %c0_26, %c0_27] : memref<1x8x1xf32, #tpu.memory_space<vmem>>, vector<1x8x1xf32>
      tpu.vector_store %arg5[%c0_25, %c0_26, %c0_27], %53 {strides = array<i32>} : memref<1x8x1xf32, #tpu.memory_space<vmem>>, vector<1x8x1xf32>,
      %cst_28 = arith.constant 0.000000e+00 : f32
      %55 = vector.broadcast %cst_28 : f32 to vector<1x8x1xf32>
      %c0_29 = arith.constant 0 : index
      %c0_30 = arith.constant 0 : index
      %c0_31 = arith.constant 0 : index
      %56 = vector.load %arg6[%c0_29, %c0_30, %c0_31] : memref<1x8x1xf32, #tpu.memory_space<vmem>>, vector<1x8x1xf32>
      tpu.vector_store %arg6[%c0_29, %c0_30, %c0_31], %55 {strides = array<i32>} : memref<1x8x1xf32, #tpu.memory_space<vmem>>, vector<1x8x1xf32>,
    } else {
    }
    %c0 = arith.constant 0 : index
    %c0_1 = arith.constant 0 : index
    %c0_2 = arith.constant 0 : index
    %3 = vector.load %arg2[%c0, %c0_1, %c0_2] : memref<1x16x128xbf16, #tpu.memory_space<vmem>>, vector<1x16x128xbf16>
    %4 = vector.shape_cast %3 : vector<1x16x128xbf16> to vector<16x128xbf16>
    %c0_3 = arith.constant 0 : index
    %c0_4 = arith.constant 0 : index
    %c0_5 = arith.constant 0 : index
    %c0_6 = arith.constant 0 : index
    %5 = vector.load %arg3[%c0_3, %c0_4, %c0_5, %c0_6] : memref<1x1x16x14xbf16, #tpu.memory_space<vmem>>, vector<1x1x16x14xbf16>
    %6 = vector.shape_cast %5 : vector<1x1x16x14xbf16> to vector<16x14xbf16>
    %7 = tpu.concatenate %4, %6 in 1 : vector<16x128xbf16>, vector<16x14xbf16> -> vector<16x142xbf16>
    %8 = vector.extract_strided_slice %7 {offsets = [0, 0], sizes = [16, 128], strides = [1, 1]} : vector<16x142xbf16> to vector<16x128xbf16>
    %9 = vector.extract_strided_slice %7 {offsets = [0, 1], sizes = [16, 128], strides = [1, 1]} : vector<16x142xbf16> to vector<16x128xbf16>
    %10 = vector.extract_strided_slice %7 {offsets = [0, 2], sizes = [16, 128], strides = [1, 1]} : vector<16x142xbf16> to vector<16x128xbf16>
    %11 = vector.extract_strided_slice %7 {offsets = [0, 3], sizes = [16, 128], strides = [1, 1]} : vector<16x142xbf16> to vector<16x128xbf16>
    %12 = vector.extract_strided_slice %7 {offsets = [0, 4], sizes = [16, 128], strides = [1, 1]} : vector<16x142xbf16> to vector<16x128xbf16>
    %13 = vector.extract_strided_slice %7 {offsets = [0, 5], sizes = [16, 128], strides = [1, 1]} : vector<16x142xbf16> to vector<16x128xbf16>
    %14 = vector.extract_strided_slice %7 {offsets = [0, 6], sizes = [16, 128], strides = [1, 1]} : vector<16x142xbf16> to vector<16x128xbf16>
    %15 = vector.extract_strided_slice %7 {offsets = [0, 7], sizes = [16, 128], strides = [1, 1]} : vector<16x142xbf16> to vector<16x128xbf16>
    %16 = vector.extract_strided_slice %7 {offsets = [0, 8], sizes = [16, 128], strides = [1, 1]} : vector<16x142xbf16> to vector<16x128xbf16>
    %17 = vector.extract_strided_slice %7 {offsets = [0, 9], sizes = [16, 128], strides = [1, 1]} : vector<16x142xbf16> to vector<16x128xbf16>
    %18 = vector.extract_strided_slice %7 {offsets = [0, 10], sizes = [16, 128], strides = [1, 1]} : vector<16x142xbf16> to vector<16x128xbf16>
    %19 = vector.extract_strided_slice %7 {offsets = [0, 11], sizes = [16, 128], strides = [1, 1]} : vector<16x142xbf16> to vector<16x128xbf16>
    %20 = vector.extract_strided_slice %7 {offsets = [0, 12], sizes = [16, 128], strides = [1, 1]} : vector<16x142xbf16> to vector<16x128xbf16>
    %21 = vector.extract_strided_slice %7 {offsets = [0, 13], sizes = [16, 128], strides = [1, 1]} : vector<16x142xbf16> to vector<16x128xbf16>
    %22 = vector.extract_strided_slice %7 {offsets = [0, 14], sizes = [16, 128], strides = [1, 1]} : vector<16x142xbf16> to vector<16x128xbf16>
    %23 = tpu.concatenate %8, %9, %10, %11, %12, %13, %14, %15, %16, %17, %18, %19, %20, %21, %22 in 0 : vector<16x128xbf16>, vector<16x128xbf16>, vector<16x128xbf16>, vector<16x128xbf16>, vector<16x128xbf16>, vector<16x128xbf16>, vector<16x128xbf16>, vector<16x128xbf16>, vector<16x128xbf16>, vector<16x128xbf16>, vector<16x128xbf16>, vector<16x128xbf16>, vector<16x128xbf16>, vector<16x128xbf16>, vector<16x128xbf16> -> vector<240x128xbf16>
    %c0_7 = arith.constant 0 : index
    %c0_8 = arith.constant 0 : index
    %24 = vector.load %arg4[%c0_7, %c0_8] : memref<8x240xbf16, #tpu.memory_space<vmem>>, vector<8x240xbf16>
    %cst = arith.constant dense<0.000000e+00> : vector<8x128xf32>
    %25 = tpu.matmul %24, %23, %cst {dimension_numbers = #tpu.dot_dimension_numbers<[1], [0], [0], [1], [0, 0, 1, 1], [], []>} : vector<8x240xbf16>, vector<240x128xbf16>, vector<8x128xf32> -> vector<8x128xf32>
    %c128_i32 = arith.constant 128 : i32
    %26 = arith.muli %arg1, %c128_i32 : i32
    %27 = tpu.iota {dimensions = array<i32: 1>} : vector<1x128xi32>
    %28 = vector.broadcast %26 : i32 to vector<1x128xi32>
    %29 = arith.addi %28, %27 : vector<1x128xi32>
    %c16_i32 = arith.constant 16 : i32
    %30 = vector.broadcast %c16_i32 : i32 to vector<1x128xi32>
    %31 = arith.cmpi slt, %29, %30 : vector<1x128xi32>
    %cst_9 = arith.constant 0.000000e+00 : f32
    %32 = vector.shape_cast %31 : vector<1x128xi1> to vector<1x128xi1>
    %33 = vector.broadcast %32 : vector<1x128xi1> to vector<8x128xi1>
    %34 = vector.broadcast %cst_9 : f32 to vector<8x128xf32>
    %35 = arith.select %33, %25, %34 : vector<8x128xi1>, vector<8x128xf32>
    %c0_10 = arith.constant 0 : index
    %c0_11 = arith.constant 0 : index
    %c0_12 = arith.constant 0 : index
    %36 = vector.load %arg5[%c0_10, %c0_11, %c0_12] : memref<1x8x1xf32, #tpu.memory_space<vmem>>, vector<1x8x1xf32>
    %37 = vector.shape_cast %36 : vector<1x8x1xf32> to vector<8x1xf32>
    %cst_13 = arith.constant dense<0.000000e+00> : vector<8xf32>
    %38 = vector.multi_reduction <add>, %35, %cst_13 [1] : vector<8x128xf32> to vector<8xf32>
    %39 = vector.shape_cast %38 : vector<8xf32> to vector<8x1xf32>
    %40 = arith.addf %37, %39 : vector<8x1xf32>
    %c0_14 = arith.constant 0 : index
    %c0_15 = arith.constant 0 : index
    %c0_16 = arith.constant 0 : index
    %41 = vector.load %arg5[%c0_14, %c0_15, %c0_16] : memref<1x8x1xf32, #tpu.memory_space<vmem>>, vector<1x8x1xf32>
    %42 = vector.shape_cast %41 : vector<1x8x1xf32> to vector<8x1xf32>
    %43 = vector.shape_cast %40 : vector<8x1xf32> to vector<1x8x1xf32>
    tpu.vector_store %arg5[%c0_14, %c0_15, %c0_16], %43 {strides = array<i32>} : memref<1x8x1xf32, #tpu.memory_space<vmem>>, vector<1x8x1xf32>,
    %c0_17 = arith.constant 0 : index
    %c0_18 = arith.constant 0 : index
    %c0_19 = arith.constant 0 : index
    %44 = vector.load %arg6[%c0_17, %c0_18, %c0_19] : memref<1x8x1xf32, #tpu.memory_space<vmem>>, vector<1x8x1xf32>
    %45 = vector.shape_cast %44 : vector<1x8x1xf32> to vector<8x1xf32>
    %46 = arith.mulf %35, %35 : vector<8x128xf32>
    %cst_20 = arith.constant dense<0.000000e+00> : vector<8xf32>
    %47 = vector.multi_reduction <add>, %46, %cst_20 [1] : vector<8x128xf32> to vector<8xf32>
    %48 = vector.shape_cast %47 : vector<8xf32> to vector<8x1xf32>
    %49 = arith.addf %45, %48 : vector<8x1xf32>
    %c0_21 = arith.constant 0 : index
    %c0_22 = arith.constant 0 : index
    %c0_23 = arith.constant 0 : index
    %50 = vector.load %arg6[%c0_21, %c0_22, %c0_23] : memref<1x8x1xf32, #tpu.memory_space<vmem>>, vector<1x8x1xf32>
    %51 = vector.shape_cast %50 : vector<1x8x1xf32> to vector<8x1xf32>
    %52 = vector.shape_cast %49 : vector<8x1xf32> to vector<1x8x1xf32>
    tpu.vector_store %arg6[%c0_21, %c0_22, %c0_23], %52 {strides = array<i32>} : memref<1x8x1xf32, #tpu.memory_space<vmem>>, vector<1x8x1xf32>,
    return
  }
  func.func @transform_0(%arg0: i32, %arg1: i32) -> (i32, i32, i32) {
    %c0_i32 = arith.constant 0 : i32
    %c0_i32_0 = arith.constant 0 : i32
    return %arg0, %c0_i32, %arg1 : i32, i32, i32
  }
  func.func @transform_1(%arg0: i32, %arg1: i32) -> (i32, i32, i32, i32) {
    %c0_i32 = arith.constant 0 : i32
    %c0_i32_0 = arith.constant 0 : i32
    %c0_i32_1 = arith.constant 0 : i32
    return %arg0, %arg1, %c0_i32, %c0_i32_0 : i32, i32, i32, i32
  }
  func.func @transform_2(%arg0: i32, %arg1: i32) -> (i32, i32) {
    %c0_i32 = arith.constant 0 : i32
    %c0_i32_0 = arith.constant 0 : i32
    %c0_i32_1 = arith.constant 0 : i32
    return %c0_i32, %c0_i32_0 : i32, i32
  }
  func.func @transform_3(%arg0: i32, %arg1: i32) -> (i32, i32, i32) {
    %c0_i32 = arith.constant 0 : i32
    %c0_i32_0 = arith.constant 0 : i32
    %c0_i32_1 = arith.constant 0 : i32
    return %arg0, %c0_i32, %c0_i32_0 : i32, i32, i32
  }
  func.func @transform_4(%arg0: i32, %arg1: i32) -> (i32, i32, i32) {
    %c0_i32 = arith.constant 0 : i32
    %c0_i32_0 = arith.constant 0 : i32
    %c0_i32_1 = arith.constant 0 : i32
    return %arg0, %c0_i32, %c0_i32_0 : i32, i32, i32
  }
}

module attributes {stable_mosaic.version = 11 : i64} {
  func.func @_conv_bn_act_kernel(%arg0: i32, %arg1: i32, %arg2: memref<1x16x128xbf16, #tpu.memory_space<vmem>>, %arg3: memref<1x1x16x14xbf16, #tpu.memory_space<vmem>>, %arg4: memref<8x240xbf16, #tpu.memory_space<vmem>>, %arg5: memref<8x1xf32, #tpu.memory_space<vmem>>, %arg6: memref<8x1xf32, #tpu.memory_space<vmem>>, %arg7: memref<1x8x128xf32, #tpu.memory_space<vmem>>) attributes {dimension_semantics = [#tpu.dimension_semantics<parallel>, #tpu.dimension_semantics<parallel>], iteration_bounds = array<i64: 2, 1>, scalar_prefetch = 0 : i64, scratch_operands = 0 : i64, tpu.core_type = #tpu.core_type<tc>, window_params = [{transform_indices = @transform_0, window_bounds = array<i64: 1, 16, 128>}, {transform_indices = @transform_1, window_bounds = array<i64: 1, 1, 16, 14>}, {pipeline_mode = #tpu.pipeline_mode<synchronous>, transform_indices = @transform_2, window_bounds = array<i64: 8, 240>}, {pipeline_mode = #tpu.pipeline_mode<synchronous>, transform_indices = @transform_3, window_bounds = array<i64: 8, 1>}, {pipeline_mode = #tpu.pipeline_mode<synchronous>, transform_indices = @transform_4, window_bounds = array<i64: 8, 1>}, {transform_indices = @transform_5, window_bounds = array<i64: 1, 8, 128>}]} {
    %c0 = arith.constant 0 : index
    %c0_0 = arith.constant 0 : index
    %c0_1 = arith.constant 0 : index
    %0 = vector.load %arg2[%c0, %c0_0, %c0_1] : memref<1x16x128xbf16, #tpu.memory_space<vmem>>, vector<1x16x128xbf16>
    %1 = vector.shape_cast %0 : vector<1x16x128xbf16> to vector<16x128xbf16>
    %c0_2 = arith.constant 0 : index
    %c0_3 = arith.constant 0 : index
    %c0_4 = arith.constant 0 : index
    %c0_5 = arith.constant 0 : index
    %2 = vector.load %arg3[%c0_2, %c0_3, %c0_4, %c0_5] : memref<1x1x16x14xbf16, #tpu.memory_space<vmem>>, vector<1x1x16x14xbf16>
    %3 = vector.shape_cast %2 : vector<1x1x16x14xbf16> to vector<16x14xbf16>
    %4 = tpu.concatenate %1, %3 in 1 : vector<16x128xbf16>, vector<16x14xbf16> -> vector<16x142xbf16>
    %5 = vector.extract_strided_slice %4 {offsets = [0, 0], sizes = [16, 128], strides = [1, 1]} : vector<16x142xbf16> to vector<16x128xbf16>
    %6 = vector.extract_strided_slice %4 {offsets = [0, 1], sizes = [16, 128], strides = [1, 1]} : vector<16x142xbf16> to vector<16x128xbf16>
    %7 = vector.extract_strided_slice %4 {offsets = [0, 2], sizes = [16, 128], strides = [1, 1]} : vector<16x142xbf16> to vector<16x128xbf16>
    %8 = vector.extract_strided_slice %4 {offsets = [0, 3], sizes = [16, 128], strides = [1, 1]} : vector<16x142xbf16> to vector<16x128xbf16>
    %9 = vector.extract_strided_slice %4 {offsets = [0, 4], sizes = [16, 128], strides = [1, 1]} : vector<16x142xbf16> to vector<16x128xbf16>
    %10 = vector.extract_strided_slice %4 {offsets = [0, 5], sizes = [16, 128], strides = [1, 1]} : vector<16x142xbf16> to vector<16x128xbf16>
    %11 = vector.extract_strided_slice %4 {offsets = [0, 6], sizes = [16, 128], strides = [1, 1]} : vector<16x142xbf16> to vector<16x128xbf16>
    %12 = vector.extract_strided_slice %4 {offsets = [0, 7], sizes = [16, 128], strides = [1, 1]} : vector<16x142xbf16> to vector<16x128xbf16>
    %13 = vector.extract_strided_slice %4 {offsets = [0, 8], sizes = [16, 128], strides = [1, 1]} : vector<16x142xbf16> to vector<16x128xbf16>
    %14 = vector.extract_strided_slice %4 {offsets = [0, 9], sizes = [16, 128], strides = [1, 1]} : vector<16x142xbf16> to vector<16x128xbf16>
    %15 = vector.extract_strided_slice %4 {offsets = [0, 10], sizes = [16, 128], strides = [1, 1]} : vector<16x142xbf16> to vector<16x128xbf16>
    %16 = vector.extract_strided_slice %4 {offsets = [0, 11], sizes = [16, 128], strides = [1, 1]} : vector<16x142xbf16> to vector<16x128xbf16>
    %17 = vector.extract_strided_slice %4 {offsets = [0, 12], sizes = [16, 128], strides = [1, 1]} : vector<16x142xbf16> to vector<16x128xbf16>
    %18 = vector.extract_strided_slice %4 {offsets = [0, 13], sizes = [16, 128], strides = [1, 1]} : vector<16x142xbf16> to vector<16x128xbf16>
    %19 = vector.extract_strided_slice %4 {offsets = [0, 14], sizes = [16, 128], strides = [1, 1]} : vector<16x142xbf16> to vector<16x128xbf16>
    %20 = tpu.concatenate %5, %6, %7, %8, %9, %10, %11, %12, %13, %14, %15, %16, %17, %18, %19 in 0 : vector<16x128xbf16>, vector<16x128xbf16>, vector<16x128xbf16>, vector<16x128xbf16>, vector<16x128xbf16>, vector<16x128xbf16>, vector<16x128xbf16>, vector<16x128xbf16>, vector<16x128xbf16>, vector<16x128xbf16>, vector<16x128xbf16>, vector<16x128xbf16>, vector<16x128xbf16>, vector<16x128xbf16>, vector<16x128xbf16> -> vector<240x128xbf16>
    %c0_6 = arith.constant 0 : index
    %c0_7 = arith.constant 0 : index
    %21 = vector.load %arg4[%c0_6, %c0_7] : memref<8x240xbf16, #tpu.memory_space<vmem>>, vector<8x240xbf16>
    %cst = arith.constant dense<0.000000e+00> : vector<8x128xf32>
    %22 = tpu.matmul %21, %20, %cst {dimension_numbers = #tpu.dot_dimension_numbers<[1], [0], [0], [1], [0, 0, 1, 1], [], []>} : vector<8x240xbf16>, vector<240x128xbf16>, vector<8x128xf32> -> vector<8x128xf32>
    %c0_8 = arith.constant 0 : index
    %c0_9 = arith.constant 0 : index
    %23 = vector.load %arg5[%c0_8, %c0_9] : memref<8x1xf32, #tpu.memory_space<vmem>>, vector<8x1xf32>
    %24 = vector.broadcast %23 : vector<8x1xf32> to vector<8x128xf32>
    %25 = arith.mulf %22, %24 : vector<8x128xf32>
    %c0_10 = arith.constant 0 : index
    %c0_11 = arith.constant 0 : index
    %26 = vector.load %arg6[%c0_10, %c0_11] : memref<8x1xf32, #tpu.memory_space<vmem>>, vector<8x1xf32>
    %27 = vector.broadcast %26 : vector<8x1xf32> to vector<8x128xf32>
    %28 = arith.addf %25, %27 : vector<8x128xf32>
    %cst_12 = arith.constant 0.000000e+00 : f32
    %29 = vector.broadcast %cst_12 : f32 to vector<8x128xf32>
    %30 = arith.cmpf oge, %28, %29 : vector<8x128xf32>
    %cst_13 = arith.constant 0.00999999977 : f32
    %31 = vector.broadcast %cst_13 : f32 to vector<8x128xf32>
    %32 = arith.mulf %31, %28 : vector<8x128xf32>
    %33 = arith.select %30, %28, %32 : vector<8x128xi1>, vector<8x128xf32>
    %c0_14 = arith.constant 0 : index
    %c0_15 = arith.constant 0 : index
    %c0_16 = arith.constant 0 : index
    %34 = vector.load %arg7[%c0_14, %c0_15, %c0_16] : memref<1x8x128xf32, #tpu.memory_space<vmem>>, vector<1x8x128xf32>
    %35 = vector.shape_cast %34 : vector<1x8x128xf32> to vector<8x128xf32>
    %36 = vector.shape_cast %33 : vector<8x128xf32> to vector<1x8x128xf32>
    tpu.vector_store %arg7[%c0_14, %c0_15, %c0_16], %36 {strides = array<i32>} : memref<1x8x128xf32, #tpu.memory_space<vmem>>, vector<1x8x128xf32>,
    return
  }
  func.func @transform_0(%arg0: i32, %arg1: i32) -> (i32, i32, i32) {
    %c0_i32 = arith.constant 0 : i32
    %c0_i32_0 = arith.constant 0 : i32
    return %arg0, %c0_i32, %arg1 : i32, i32, i32
  }
  func.func @transform_1(%arg0: i32, %arg1: i32) -> (i32, i32, i32, i32) {
    %c0_i32 = arith.constant 0 : i32
    %c0_i32_0 = arith.constant 0 : i32
    %c0_i32_1 = arith.constant 0 : i32
    return %arg0, %arg1, %c0_i32, %c0_i32_0 : i32, i32, i32, i32
  }
  func.func @transform_2(%arg0: i32, %arg1: i32) -> (i32, i32) {
    %c0_i32 = arith.constant 0 : i32
    %c0_i32_0 = arith.constant 0 : i32
    %c0_i32_1 = arith.constant 0 : i32
    return %c0_i32, %c0_i32_0 : i32, i32
  }
  func.func @transform_3(%arg0: i32, %arg1: i32) -> (i32, i32) {
    %c0_i32 = arith.constant 0 : i32
    %c0_i32_0 = arith.constant 0 : i32
    %c0_i32_1 = arith.constant 0 : i32
    return %c0_i32, %c0_i32_0 : i32, i32
  }
  func.func @transform_4(%arg0: i32, %arg1: i32) -> (i32, i32) {
    %c0_i32 = arith.constant 0 : i32
    %c0_i32_0 = arith.constant 0 : i32
    %c0_i32_1 = arith.constant 0 : i32
    return %c0_i32, %c0_i32_0 : i32, i32
  }
  func.func @transform_5(%arg0: i32, %arg1: i32) -> (i32, i32, i32) {
    %c0_i32 = arith.constant 0 : i32
    %c0_i32_0 = arith.constant 0 : i32
    return %arg0, %c0_i32, %arg1 : i32, i32, i32
  }
}

</mosaic_0001>

<llo_original>
// kernel: downsampling_layer.3
$region0: #{downsampling_layer.3}
  #allocation0 [shape = 'u32[]', space=smem, size = 0x4, offset = 0x4, fixed_abs, tag = 'smem constant byte address 0x4 - core index']
  #allocation1 [shape = 'u32[72,128]{1,0:T(1,128)}', space=vmem, size = 0x9000, scoped, tag = 'internal scratch']
  %s0 = inlined_call_operand.vmem [shape: bf16[2,16,256], index: 0, kind: input, shape index: {}]
  %s1 = inlined_call_operand.vmem [shape: bf16[2,1,16,14], index: 1, kind: input, shape index: {}]
  %s2 = inlined_call_operand.vmem [shape: bf16[8,240], index: 2, kind: input, shape index: {}]
  %s3 = inlined_call_operand.vmem [shape: f32[8,1], index: 3, kind: input, shape index: {}]
  %s4 = inlined_call_operand.vmem [shape: f32[8,1], index: 4, kind: input, shape index: {}]
  %s5 = inlined_call_operand.hbm [shape: f32[2,8,16], index: 5, kind: output, shape index: {}]
  %s6 = sld [smem:[#allocation0]]
  $region94: #{downsampling_layer.3} parent=0
    _
  %s8 = ssub.s32 1, %s6
  %s9 = scalar_select 0, %s8, %s6
  $region1: #{downsampling_layer.3} parent=0
    #allocation2 [shape = 'u8[8192]{0}', space=vmem, size = 0x2000, scoped, tag = 'input window, operand 0']
    #allocation3 [shape = 'u8[8192]{0}', space=vmem, size = 0x2000, scoped, tag = 'output window, operand 0']
    #allocation4 [shape = 's32[2]{0}', space=sflag, size = 0x8, scoped, tag = 'scoped memory for downsampling_layer.3']
    %10 = vsyncpa [#allocation4], 0
    %s11 = scalar_lea.sflag [#allocation4], 1
    %12 = vsyncpa %s11, 0
    loop: start=0, step=1, limit=4
    $region2: #{downsampling_layer.3} parent=1 // loop_pre_header
      _
    $region3: #{downsampling_layer.3} parent=1 // loop_header
      %s14 = sphi 0, %s18
      %p15 = scmp.ge.s32.totalorder %s14, 4
      %s21 = sphi 0, %s33
      %s22 = sphi 0, %s29
      %s23 = sphi 0, %s21
      %s24 = sphi 0, %s22
      %s25 = sphi 0, %s23
      %s26 = sphi 0, %s24
      %s38 = sphi 0, %s40
      %s41 = sphi 0, %s38
      %s42 = sphi 0, %s41
      %s58 = sphi 0, %s42
      %s66 = sphi 0, %s68
      %s69 = sphi 0, %s66
      %s70 = sphi 0, %s69
      %s86 = sphi 0, %s70
      %s90 = sphi 0, %s90
      %s92 = sphi 0, %s90
      %s93 = sphi 0, %s92
      %s107 = sphi 0, %s93
      %s111 = sphi 0, %s111
      %s113 = sphi 0, %s111
      %s114 = sphi 0, %s113
      %s128 = sphi 0, %s114
      %s132 = sphi 0, %s132
      %s134 = sphi 0, %s132
      %s135 = sphi 0, %s134
      %s149 = sphi 0, %s135
      %s157 = sphi 0, %s159
      %s160 = sphi 0, %s157
      %s161 = sphi 0, %s160
      %s177 = sphi 0, %s161
    $region4: #{downsampling_layer.3} parent=1 // loop_header_branch
      %17 = sbr.rel (%p15) target = $region8
    $region5: #{downsampling_layer.3} parent=1 // loop_body
      %s19 = ssub.s32 %s14, 1
      %s20 = ssub.s32 %s14, 2
      %s27 = sadd.s32 1, %s22
      %p28 = scmp.ge.s32.totalorder %s27, 1
      %s29 = scalar_select %p28, 0, %s27
      %s30 = sadd.s32 1, %s21
      %s31 = scalar_select %p28, %s30, %s21
      %p32 = scmp.ge.s32.totalorder %s31, 2
      %s33 = scalar_select %p32, 0, %s31
      %s34 = ssub.s32 %s21, %s33
      %s35 = ssub.s32 %s22, %s29
      %s36 = sor.u32 %s34, %s35
      %p37 = scmp.eq.s32.totalorder %s36, 0
      %s39 = sadd.s32 %s38, 1
      %s40 = scalar_select %p37, %s38, %s39
      %p43 = pneg %p37
      %p44 = scmp.eq.s32.totalorder %s14, 1
      %p45 = por %p43, %p44
      %p46 = scmp.ne.s32.totalorder %s38, %s41
      %p47 = scmp.eq.s32.totalorder %s14, 0
      %p48 = por %p46, %p47
      %p49 = scmp.ne.s32.totalorder %s38, %s41
      %p50 = scmp.eq.s32.totalorder %s19, 1
      %p51 = por %p49, %p50
      %p52 = scmp.ne.s32.totalorder %s41, %s42
      %p53 = scmp.eq.s32.totalorder %s19, 0
      %p54 = por %p52, %p53
      %p55 = scmp.ne.s32.totalorder %s41, %s42
      %p56 = scmp.eq.s32.totalorder %s20, 1
      %p57 = por %p55, %p56
      %p59 = scmp.ne.s32.totalorder %s42, %s58
      %p60 = scmp.eq.s32.totalorder %s20, 0
      %p61 = por %p59, %p60
      %s62 = ssub.s32 %s21, %s33
      %s63 = ssub.s32 %s22, %s29
      %s64 = sor.u32 %s62, %s63
      %p65 = scmp.eq.s32.totalorder %s64, 0
      %s67 = sadd.s32 %s66, 1
      %s68 = scalar_select %p65, %s66, %s67
      %p71 = pneg %p65
      %p72 = scmp.eq.s32.totalorder %s14, 1
      %p73 = por %p71, %p72
      %p74 = scmp.ne.s32.totalorder %s66, %s69
      %p75 = scmp.eq.s32.totalorder %s14, 0
      %p76 = por %p74, %p75
      %p77 = scmp.ne.s32.totalorder %s66, %s69
      %p78 = scmp.eq.s32.totalorder %s19, 1
      %p79 = por %p77, %p78
      %p80 = scmp.ne.s32.totalorder %s69, %s70
      %p81 = scmp.eq.s32.totalorder %s19, 0
      %p82 = por %p80, %p81
      %p83 = scmp.ne.s32.totalorder %s69, %s70
      %p84 = scmp.eq.s32.totalorder %s20, 1
      %p85 = por %p83, %p84
      %p87 = scmp.ne.s32.totalorder %s70, %s86
      %p88 = scmp.eq.s32.totalorder %s20, 0
      %p89 = por %p87, %p88
      %s91 = sadd.s32 %s90, 1
      %p94 = scmp.eq.s32.totalorder %s14, 1
      %p95 = scmp.ne.s32.totalorder %s90, %s92
      %p96 = scmp.eq.s32.totalorder %s14, 0
      %p97 = por %p95, %p96
      %p98 = scmp.ne.s32.totalorder %s90, %s92
      %p99 = scmp.eq.s32.totalorder %s19, 1
      %p100 = por %p98, %p99
      %p101 = scmp.ne.s32.totalorder %s92, %s93
      %p102 = scmp.eq.s32.totalorder %s19, 0
      %p103 = por %p101, %p102
      %p104 = scmp.ne.s32.totalorder %s92, %s93
      %p105 = scmp.eq.s32.totalorder %s20, 1
      %p106 = por %p104, %p105
      %p108 = scmp.ne.s32.totalorder %s93, %s107
      %p109 = scmp.eq.s32.totalorder %s20, 0
      %p110 = por %p108, %p109
      %s112 = sadd.s32 %s111, 1
      %p115 = scmp.eq.s32.totalorder %s14, 1
      %p116 = scmp.ne.s32.totalorder %s111, %s113
      %p117 = scmp.eq.s32.totalorder %s14, 0
      %p118 = por %p116, %p117
      %p119 = scmp.ne.s32.totalorder %s111, %s113
      %p120 = scmp.eq.s32.totalorder %s19, 1
      %p121 = por %p119, %p120
      %p122 = scmp.ne.s32.totalorder %s113, %s114
      %p123 = scmp.eq.s32.totalorder %s19, 0
      %p124 = por %p122, %p123
      %p125 = scmp.ne.s32.totalorder %s113, %s114
      %p126 = scmp.eq.s32.totalorder %s20, 1
      %p127 = por %p125, %p126
      %p129 = scmp.ne.s32.totalorder %s114, %s128
      %p130 = scmp.eq.s32.totalorder %s20, 0
      %p131 = por %p129, %p130
      %s133 = sadd.s32 %s132, 1
      %p136 = scmp.eq.s32.totalorder %s14, 1
      %p137 = scmp.ne.s32.totalorder %s132, %s134
      %p138 = scmp.eq.s32.totalorder %s14, 0
      %p139 = por %p137, %p138
      %p140 = scmp.ne.s32.totalorder %s132, %s134
      %p141 = scmp.eq.s32.totalorder %s19, 1
      %p142 = por %p140, %p141
      %p143 = scmp.ne.s32.totalorder %s134, %s135
      %p144 = scmp.eq.s32.totalorder %s19, 0
      %p145 = por %p143, %p144
      %p146 = scmp.ne.s32.totalorder %s134, %s135
      %p147 = scmp.eq.s32.totalorder %s20, 1
      %p148 = por %p146, %p147
      %p150 = scmp.ne.s32.totalorder %s135, %s149
      %p151 = scmp.eq.s32.totalorder %s20, 0
      %p152 = por %p150, %p151
      %s153 = ssub.s32 %s21, %s33
      %s154 = ssub.s32 %s22, %s29
      %s155 = sor.u32 %s153, %s154
      %p156 = scmp.eq.s32.totalorder %s155, 0
      %s158 = sadd.s32 %s157, 1
      %s159 = scalar_select %p156, %s157, %s158
      %p162 = pneg %p156
      %p163 = scmp.eq.s32.totalorder %s14, 1
      %p164 = por %p162, %p163
      %p165 = scmp.ne.s32.totalorder %s157, %s160
      %p166 = scmp.eq.s32.totalorder %s14, 0
      %p167 = por %p165, %p166
      %p168 = scmp.ne.s32.totalorder %s157, %s160
      %p169 = scmp.eq.s32.totalorder %s19, 1
      %p170 = por %p168, %p169
      %p171 = scmp.ne.s32.totalorder %s160, %s161
      %p172 = scmp.eq.s32.totalorder %s19, 0
      %p173 = por %p171, %p172
      %p174 = scmp.ne.s32.totalorder %s160, %s161
      %p175 = scmp.eq.s32.totalorder %s20, 1
      %p176 = por %p174, %p175
      %p178 = scmp.ne.s32.totalorder %s161, %s177
      %p179 = scmp.eq.s32.totalorder %s20, 0
      %p180 = por %p178, %p179
      %p181 = scmp.le.s32.totalorder 1, %s14
      %p182 = scmp.lt.s32.totalorder %s14, 3
      %p183 = pnand %p181, %p182
      %p184 = pneg %p183
      // Predicated region
      $region9: #{downsampling_layer.3} parent=5 // pred_check
        _
      $region10: #{downsampling_layer.3} parent=5 // pred_check_branch
        %186 = sbr.rel (%p183) target = $region12
      $region11: #{downsampling_layer.3} parent=5 // pred_region
        %s187 = ssub.s32 %s14, 1
        // Predicated region
        $region13: #{downsampling_layer.3} parent=11 // pred_check
          %p188 = pneg %p103
        $region14: #{downsampling_layer.3} parent=11 // pred_check_branch
          %190 = sbr.rel (%p188) target = $region16
        $region15: #{downsampling_layer.3} parent=11 // pred_region
          _
        $region16: #{downsampling_layer.3} parent=11 // pred_fallthru
          _
        // Predicated region
        $region17: #{downsampling_layer.3} parent=11 // pred_check
          %p191 = pneg %p124
        $region18: #{downsampling_layer.3} parent=11 // pred_check_branch
          %193 = sbr.rel (%p191) target = $region20
        $region19: #{downsampling_layer.3} parent=11 // pred_region
          _
        $region20: #{downsampling_layer.3} parent=11 // pred_fallthru
          _
        // Predicated region
        $region21: #{downsampling_layer.3} parent=11 // pred_check
          %p194 = pneg %p145
        $region22: #{downsampling_layer.3} parent=11 // pred_check_branch
          %196 = sbr.rel (%p194) target = $region24
        $region23: #{downsampling_layer.3} parent=11 // pred_region
          _
        $region24: #{downsampling_layer.3} parent=11 // pred_fallthru
          _
      $region12: #{downsampling_layer.3} parent=5 // pred_fallthru
        _
      %p197 = scmp.lt.s32.totalorder %s14, 2
      // Predicated region
      $region25: #{downsampling_layer.3} parent=5 // pred_check
        %p198 = pneg %p197
      $region26: #{downsampling_layer.3} parent=5 // pred_check_branch
        %200 = sbr.rel (%p198) target = $region28
      $region27: #{downsampling_layer.3} parent=5 // pred_region
        // Predicated region
        $region29: #{downsampling_layer.3} parent=27 // pred_check
          %p201 = pneg %p48
        $region30: #{downsampling_layer.3} parent=27 // pred_check_branch
          %203 = sbr.rel (%p201) target = $region32
        $region31: #{downsampling_layer.3} parent=27 // pred_region
          %s204 = sand.u32 %s38, 1
          %s205 = sand.u32 %s38, 1
          %s206 = smul.addr %s205, 8
          %s207 = scalar_lea.vmem [#allocation2], %s206
          %s208 = smul.addr %s21, 4
          %s209 = sadd.s32 %s22, %s208
          %s210 = smul.addr %s209, 4
          %s211 = scalar_lea.vmem %s0, %s210
          // Predicated region
          $region33: #{downsampling_layer.3} parent=31 // pred_check
            _
          $region34: #{downsampling_layer.3} parent=31 // pred_check_branch
            %213 = sbr.rel (0) target = $region36
          $region35: #{downsampling_layer.3} parent=31 // pred_region
            // Predicated region
            $region37: #{downsampling_layer.3} parent=35 // pred_check
              _
            $region38: #{downsampling_layer.3} parent=35 // pred_check_branch
              %215 = sbr.rel target = $region40
            $region39: #{downsampling_layer.3} parent=35 // pred_region
              // Predicated region
              $region52: #{downsampling_layer.3} parent=39 // pred_check
                _
              $region53: #{downsampling_layer.3} parent=39 // pred_check_branch
                %233 = sbr.rel (0) target = $region55
              $region54: #{downsampling_layer.3} parent=39 // pred_region
                loop: start=0, step=1, limit=1
                $region56: #{downsampling_layer.3} parent=54 // loop_pre_header
                  _
                $region57: #{downsampling_layer.3} parent=54 // loop_header
                  %s235 = sphi 0, %s239
                  %p236 = scmp.ge.s32.totalorder %s235, 1
                  %s240 = sphi %s211, %s211
                  %s241 = sphi %s207, %s207
                $region58: #{downsampling_layer.3} parent=54 // loop_header_branch
                  %238 = sbr.rel (%p236) target = $region62
                $region59: #{downsampling_layer.3} parent=54 // loop_body
                  _
                $region60: #{downsampling_layer.3} parent=54 // loop_footer
                  %s239 = sadd.s32 1, %s235
                $region61: #{downsampling_layer.3} parent=54 // loop_footer_branch
                  %234 = sbr.rel target = $region57
                $region62: #{downsampling_layer.3} parent=54 // loop_exit
                  _
                %s243 = ssub.s32 16, 1
                loop: start=0, step=1, limit=1
                $region63: #{downsampling_layer.3} parent=54 // loop_pre_header
                  _
                $region64: #{downsampling_layer.3} parent=54 // loop_header
                  %s245 = sphi 0, %s249
                  %p246 = scmp.ge.s32.totalorder %s245, 1
                  %s250 = sphi %s211, %s211
                  %s251 = sphi %s207, %s207
                $region65: #{downsampling_layer.3} parent=54 // loop_header_branch
                  %248 = sbr.rel (%p246) target = $region69
                $region66: #{downsampling_layer.3} parent=54 // loop_body
                  %v252 = vld [vmem:[%s250] sm:%s243]
                  %253 = vst [vmem:[%s251] sm:%s243] %v252
                  %v254 = vld [vmem:[%s250 + $0x8] sm:%s243]
                  %255 = vst [vmem:[%s251 + $0x4] sm:%s243] %v254
                $region67: #{downsampling_layer.3} parent=54 // loop_footer
                  %s249 = sadd.s32 1, %s245
                $region68: #{downsampling_layer.3} parent=54 // loop_footer_branch
                  %244 = sbr.rel target = $region64
                $region69: #{downsampling_layer.3} parent=54 // loop_exit
                  _
              $region55: #{downsampling_layer.3} parent=39 // pred_fallthru
                _
            $region40: #{downsampling_layer.3} parent=35 // pred_fallthru
              _
            // Predicated region
            $region41: #{downsampling_layer.3} parent=35 // pred_check
              _
            $region42: #{downsampling_layer.3} parent=35 // pred_check_branch
              %217 = sbr.rel (0) target = $region44
            $region43: #{downsampling_layer.3} parent=35 // pred_region
              %s219 = ssub.s32 16, 1
              loop: start=0, step=1, limit=1
              $region45: #{downsampling_layer.3} parent=43 // loop_pre_header
                _
              $region46: #{downsampling_layer.3} parent=43 // loop_header
                %s221 = sphi 0, %s225
                %p222 = scmp.ge.s32.totalorder %s221, 1
                %s226 = sphi %s211, %s211
                %s227 = sphi %s207, %s207
              $region47: #{downsampling_layer.3} parent=43 // loop_header_branch
                %224 = sbr.rel (%p222) target = $region51
              $region48: #{downsampling_layer.3} parent=43 // loop_body
                %v228 = vld [vmem:[%s226] sm:%s219]
                %229 = vst [vmem:[%s227] sm:%s219] %v228
                %v230 = vld [vmem:[%s226 + $0x8] sm:%s219]
                %231 = vst [vmem:[%s227 + $0x4] sm:%s219] %v230
              $region49: #{downsampling_layer.3} parent=43 // loop_footer
                %s225 = sadd.s32 1, %s221
              $region50: #{downsampling_layer.3} parent=43 // loop_footer_branch
                %220 = sbr.rel target = $region46
              $region51: #{downsampling_layer.3} parent=43 // loop_exit
                _
            $region44: #{downsampling_layer.3} parent=35 // pred_fallthru
              _
          $region36: #{downsampling_layer.3} parent=31 // pred_fallthru
            _
          %256 = vnop
        $region32: #{downsampling_layer.3} parent=27 // pred_fallthru
          _
        // Predicated region
        $region70: #{downsampling_layer.3} parent=27 // pred_check
          %p257 = pneg %p76
        $region71: #{downsampling_layer.3} parent=27 // pred_check_branch
          %259 = sbr.rel (%p257) target = $region73
        $region72: #{downsampling_layer.3} parent=27 // pred_region
          %p260 = scmp.lt.s32.totalorder %s21, 1
          %s261 = scalar_select %p260, %s21, 1
          %p262 = scmp.lt.s32.totalorder %s22, 0
          %s263 = scalar_select %p262, %s22, 0
          %s264 = smul.addr %s263, 2
          %s265 = smul.addr %s261, 2
          %s266 = sadd.s32 %s264, %s265
          %s267 = smul.addr %s266, 4
          %s268 = scalar_lea.vmem %s1, %s267
        $region73: #{downsampling_layer.3} parent=27 // pred_fallthru
          _
      $region28: #{downsampling_layer.3} parent=5 // pred_fallthru
        _
      %p269 = scmp.le.s32.totalorder 1, %s14
      %p270 = scmp.lt.s32.totalorder %s14, 3
      %p271 = pnand %p269, %p270
      %p272 = pneg %p271
      // Predicated region
      $region74: #{downsampling_layer.3} parent=5 // pred_check
        _
      $region75: #{downsampling_layer.3} parent=5 // pred_check_branch
        %274 = sbr.rel (%p271) target = $region77
      $region76: #{downsampling_layer.3} parent=5 // pred_region
        %s275 = ssub.s32 %s14, 1
        %s276 = sand.u32 %s41, 1
        %s277 = sand.u32 %s41, 1
        %s278 = smul.addr %s277, 8
        %s279 = scalar_lea.vmem [#allocation2], %s278
        // Predicated region
        $region78: #{downsampling_layer.3} parent=76 // pred_check
          %p280 = pneg %p54
        $region79: #{downsampling_layer.3} parent=76 // pred_check_branch
          %282 = sbr.rel (%p280) target = $region81
        $region80: #{downsampling_layer.3} parent=76 // pred_region
          _
        $region81: #{downsampling_layer.3} parent=76 // pred_fallthru
          _
        %s283 = sand.u32 %s41, 1
        %s284 = sand.u32 %s41, 1
        %s285 = smul.addr %s284, 8
        %s286 = scalar_lea.vmem [#allocation2], %s285
        %p287 = pneg %p54
        %p288 = pneg %p51
        %p289 = scmp.lt.s32.totalorder %s23, 1
        %s290 = scalar_select %p289, %s23, 1
        %p291 = scmp.lt.s32.totalorder %s24, 0
        %s292 = scalar_select %p291, %s24, 0
        %s293 = smul.addr %s292, 2
        %s294 = smul.addr %s290, 2
        %s295 = sadd.s32 %s293, %s294
        %s296 = smul.addr %s295, 4
        %s297 = scalar_lea.vmem %s1, %s296
        %p298 = pneg %p82
        %p299 = pneg %p79
        %p300 = pneg %p103
        %p301 = pneg %p100
        %p302 = pneg %p124
        %p303 = pneg %p121
        %p304 = pneg %p145
        %p305 = pneg %p142
        %p306 = pneg %p173
        %p307 = pneg %p170
        %s308 = sand.u32 %s160, 1
        %s309 = scalar_lea.sflag [#allocation4], %s308
        %s310 = sand.u32 %s160, 1
        %s311 = smul.addr %s310, 8
        %s312 = scalar_lea.vmem [#allocation3], %s311
        %p313 = scmp.lt.s32.totalorder %s23, 1
        %s314 = scalar_select %p313, %s23, 1
        %p315 = scmp.lt.s32.totalorder %s24, 0
        %s316 = scalar_select %p315, %s24, 0
        %s317 = smul.addr %s316, 2
        %s318 = smul.addr %s314, 2
        %s319 = sadd.s32 %s317, %s318
        %s320 = smul.addr %s319, 4
        %s321 = scalar_lea.vmem %s1, %s320
        %v323 = vld [vmem:[%s279] sm:$0xf]
        %v324 = vld [vmem:[%s279 + $0x4] sm:$0xf]
        %v325 = vld [vmem:[%s321] sm:$0xf]
        %v326 = vld [vmem:[%s321 + $0x4] sm:$0xf]
        %v329 = vunpack.c.l.b16 %v323
        %v330 = vunpack.c.l.b16 %v324
        %v331 = vpack.c.b16 %v330, %v329
        %v335 = vunpack.c.l.b16 %v325
        %v336 = vunpack.c.l.b16 %v326
        %v337 = vpack.c.b16 %v336, %v335
        %338 = vrot.lane.b32.xlu0 %v331, 127
        %v339 = vpop.permute.xlu0 %338
        %340 = vrot.lane.b32.xlu0 %v337, 127
        %v341 = vpop.permute.xlu0 %340
        %vm342 = vcmask 1039360
        %v343 = vsel %vm342, %v339, %v341
        %345 = vrot.lane.b32.xlu0 %v331, 126
        %v346 = vpop.permute.xlu0 %345
        %347 = vrot.lane.b32.xlu0 %v337, 126
        %v348 = vpop.permute.xlu0 %347
        %vm349 = vcmask 1031168
        %v350 = vsel %vm349, %v346, %v348
        %352 = vrot.lane.b32.xlu0 %v331, 125
        %v353 = vpop.permute.xlu0 %352
        %354 = vrot.lane.b32.xlu0 %v337, 125
        %v355 = vpop.permute.xlu0 %354
        %vm356 = vcmask 1022976
        %v357 = vsel %vm356, %v353, %v355
        %359 = vrot.lane.b32.xlu0 %v331, 124
        %v360 = vpop.permute.xlu0 %359
        %361 = vrot.lane.b32.xlu0 %v337, 124
        %v362 = vpop.permute.xlu0 %361
        %vm363 = vcmask 1014784
        %v364 = vsel %vm363, %v360, %v362
        %366 = vrot.lane.b32.xlu0 %v331, 123
        %v367 = vpop.permute.xlu0 %366
        %368 = vrot.lane.b32.xlu0 %v337, 123
        %v369 = vpop.permute.xlu0 %368
        %vm370 = vcmask 1006592
        %v371 = vsel %vm370, %v367, %v369
        %373 = vrot.lane.b32.xlu0 %v331, 122
        %v374 = vpop.permute.xlu0 %373
        %375 = vrot.lane.b32.xlu0 %v337, 122
        %v376 = vpop.permute.xlu0 %375
        %vm377 = vcmask 998400
        %v378 = vsel %vm377, %v374, %v376
        %380 = vrot.lane.b32.xlu0 %v331, 121
        %v381 = vpop.permute.xlu0 %380
        %382 = vrot.lane.b32.xlu0 %v337, 121
        %v383 = vpop.permute.xlu0 %382
        %vm384 = vcmask 990208
        %v385 = vsel %vm384, %v381, %v383
        %387 = vrot.lane.b32.xlu0 %v331, 120
        %v388 = vpop.permute.xlu0 %387
        %389 = vrot.lane.b32.xlu0 %v337, 120
        %v390 = vpop.permute.xlu0 %389
        %vm391 = vcmask 982016
        %v392 = vsel %vm391, %v388, %v390
        %394 = vrot.lane.b32.xlu0 %v331, 119
        %v395 = vpop.permute.xlu0 %394
        %396 = vrot.lane.b32.xlu0 %v337, 119
        %v397 = vpop.permute.xlu0 %396
        %vm398 = vcmask 973824
        %v399 = vsel %vm398, %v395, %v397
        %401 = vrot.lane.b32.xlu0 %v331, 118
        %v402 = vpop.permute.xlu0 %401
        %403 = vrot.lane.b32.xlu0 %v337, 118
        %v404 = vpop.permute.xlu0 %403
        %vm405 = vcmask 965632
        %v406 = vsel %vm405, %v402, %v404
        %408 = vrot.lane.b32.xlu0 %v331, 117
        %v409 = vpop.permute.xlu0 %408
        %410 = vrot.lane.b32.xlu0 %v337, 117
        %v411 = vpop.permute.xlu0 %410
        %vm412 = vcmask 957440
        %v413 = vsel %vm412, %v409, %v411
        %415 = vrot.lane.b32.xlu0 %v331, 116
        %v416 = vpop.permute.xlu0 %415
        %417 = vrot.lane.b32.xlu0 %v337, 116
        %v418 = vpop.permute.xlu0 %417
        %vm419 = vcmask 949248
        %v420 = vsel %vm419, %v416, %v418
        %422 = vrot.lane.b32.xlu0 %v331, 115
        %v423 = vpop.permute.xlu0 %422
        %424 = vrot.lane.b32.xlu0 %v337, 115
        %v425 = vpop.permute.xlu0 %424
        %vm426 = vcmask 941056
        %v427 = vsel %vm426, %v423, %v425
        %429 = vrot.lane.b32.xlu0 %v331, 114
        %v430 = vpop.permute.xlu0 %429
        %431 = vrot.lane.b32.xlu0 %v337, 114
        %v432 = vpop.permute.xlu0 %431
        %vm433 = vcmask 932864
        %v434 = vsel %vm433, %v430, %v432
        %v436 = vld [vmem:[%s2] sm:$0xff]
        %v438 = vunpack.c.l.b16 %v436
        %v439 = vunpack.c.h.b16 %v436
        %v440 = vpack.c.b16 %v438, %v438
        %v441 = vpack.c.b16 %v439, %v439
        %vm443 = vcmask 916480
        %v445 = vsel %vm443, %v441, 0
        %447 = vmatpush.bf16.msra.mxu0 %v385
        %448 = vmatpush.bf16.msra.mxu0 %v378
        %449 = vmatpush.bf16.msra.mxu0 %v371
        %450 = vmatpush.bf16.msra.mxu0 %v364
        %451 = vmatpush.bf16.msra.mxu0 %v357
        %452 = vmatpush.bf16.msra.mxu0 %v350
        %453 = vmatpush.bf16.msra.mxu0 %v343
        %454 = vmatpush.bf16.msra.mxu0 %v331
        %455 = vmatmul.bf16.gmra.mxu0 %v440
        %v456 = vpop.f32.mrf.mxu0
        %v457 = vadd.f32 0.0, %v456
        %v458 = vpop.f32.mrf.mxu0
        %459 = vdwg.mxu0
        %460 = vmatpush.bf16.msra.mxu0 0
        %461 = vmatpush.bf16.msra.mxu0 %v434
        %462 = vmatpush.bf16.msra.mxu0 %v427
        %463 = vmatpush.bf16.msra.mxu0 %v420
        %464 = vmatpush.bf16.msra.mxu0 %v413
        %465 = vmatpush.bf16.msra.mxu0 %v406
        %466 = vmatpush.bf16.msra.mxu0 %v399
        %467 = vmatpush.bf16.msra.mxu0 %v392
        %468 = vmatmul.bf16.gmra.mxu0 %v445
        %v469 = vpop.f32.mrf.mxu0
        %v470 = vadd.f32 %v457, %v469
        %v471 = vpop.f32.mrf.mxu0
        %472 = vdwg.mxu0
        %v473 = vld [vmem:[%s3] sm:$0xff]
        %475 = vset.pattern.permute.xlu0 0
        %476 = vperm.xlu0 %475, %v473
        %v477 = vpop.permute.xlu0 %476
        %v479 = vmul.f32 %v470, %v477
        %v480 = vld [vmem:[%s4] sm:$0xff]
        %482 = vset.pattern.permute.xlu0 0
        %483 = vperm.xlu0 %482, %v480
        %v484 = vpop.permute.xlu0 %483
        %v486 = vadd.f32 %v479, %v484
        %vm487 = vcmp.ge.f32.partialorder %v486, 0.0
        %v488 = vmul.f32 %v486, 0.01
        %v489 = vsel %vm487, %v486, %v488
        %490 = vst [vmem:[%s312] sm:$0xff] %v489
        %s491 = sand.u32 %s160, 1
        %s492 = scalar_lea.sflag [#allocation4], %s491
        %s493 = sand.u32 %s160, 1
        %s494 = smul.addr %s493, 8
        %s495 = scalar_lea.vmem [#allocation3], %s494
        // Predicated region
        $region82: #{downsampling_layer.3} parent=76 // pred_check
          %p496 = pneg %p170
        $region83: #{downsampling_layer.3} parent=76 // pred_check_branch
          %498 = sbr.rel (%p496) target = $region85
        $region84: #{downsampling_layer.3} parent=76 // pred_region
          %500 = vsyncadd %s492, 0
          %s501 = sadd.s32 %s24, %s23
          %s502 = smul.addr %s501, 8
          %s503 = scalar_lea.hbm %s5, %s502
          %s505 = sshll.u32 %s495, 4
          %s506 = int_to_ptr.vmem [resolvable:$true] %s505
          %s507 = sshll.u32 %s503, 4
          %s508 = int_to_ptr.hbm [resolvable:$true] %s507
          %510 = dma.vmem_to_hbm [thread:$0]  %s506, 128, %s508, %s492
        $region85: #{downsampling_layer.3} parent=76 // pred_fallthru
          _
      $region77: #{downsampling_layer.3} parent=5 // pred_fallthru
        _
      %p511 = scmp.le.s32.totalorder 2, %s14
      // Predicated region
      $region86: #{downsampling_layer.3} parent=5 // pred_check
        %p512 = pneg %p511
      $region87: #{downsampling_layer.3} parent=5 // pred_check_branch
        %514 = sbr.rel (%p512) target = $region89
      $region88: #{downsampling_layer.3} parent=5 // pred_region
        %s515 = ssub.s32 %s14, 2
        // Predicated region
        $region90: #{downsampling_layer.3} parent=88 // pred_check
          %p516 = pneg %p176
        $region91: #{downsampling_layer.3} parent=88 // pred_check_branch
          %518 = sbr.rel (%p516) target = $region93
        $region92: #{downsampling_layer.3} parent=88 // pred_region
          %s519 = sand.u32 %s161, 1
          %s520 = scalar_lea.sflag [#allocation4], %s519
          %s521 = sand.u32 %s161, 1
          %s522 = smul.addr %s521, 8
          %s523 = scalar_lea.vmem [#allocation3], %s522
          %525 = dma.done %s520, 128
        $region93: #{downsampling_layer.3} parent=88 // pred_fallthru
          _
      $region89: #{downsampling_layer.3} parent=5 // pred_fallthru
        _
    $region6: #{downsampling_layer.3} parent=1 // loop_footer
      %s18 = sadd.s32 1, %s14
    $region7: #{downsampling_layer.3} parent=1 // loop_footer_branch
      %13 = sbr.rel target = $region3
    $region8: #{downsampling_layer.3} parent=1 // loop_exit
      _
    %526 = vsyncpa [#allocation4], 1
    %s527 = scalar_lea.sflag [#allocation4], 1
    %528 = vsyncpa %s527, 1

// kernel: downsampling_layer.2
$region0: #{downsampling_layer.2}
  #allocation0 [shape = 'u32[]', space=smem, size = 0x4, offset = 0x4, fixed_abs, tag = 'smem constant byte address 0x4 - core index']
  #allocation1 [shape = 'u32[72,128]{1,0:T(1,128)}', space=vmem, size = 0x9000, scoped, tag = 'internal scratch']
  %s0 = inlined_call_operand.vmem [shape: bf16[2,16,256], index: 0, kind: input, shape index: {}]
  %s1 = inlined_call_operand.vmem [shape: bf16[2,1,16,14], index: 1, kind: input, shape index: {}]
  %s2 = inlined_call_operand.vmem [shape: bf16[8,240], index: 2, kind: input, shape index: {}]
  %s3 = inlined_call_operand.vmem [shape: f32[2,8,1], index: 3, kind: output, shape index: {0}]
  %s4 = inlined_call_operand.vmem [shape: f32[2,8,1], index: 4, kind: output, shape index: {1}]
  %5 = xla_tuple %s3, %s4
  %s6 = sld [smem:[#allocation0]]
  $region98: #{downsampling_layer.2} parent=0
    _
  %s8 = ssub.s32 1, %s6
  %s9 = scalar_select 0, %s8, %s6
  $region1: #{downsampling_layer.2} parent=0
    #allocation2 [shape = 'u8[8192]{0}', space=vmem, size = 0x2000, scoped, tag = 'input window, operand 0']
    loop: start=0, step=1, limit=4
    $region2: #{downsampling_layer.2} parent=1 // loop_pre_header
      _
    $region3: #{downsampling_layer.2} parent=1 // loop_header
      %s11 = sphi 0, %s15
      %p12 = scmp.ge.s32.totalorder %s11, 4
      %s18 = sphi 0, %s30
      %s19 = sphi 0, %s26
      %s20 = sphi 0, %s18
      %s21 = sphi 0, %s19
      %s22 = sphi 0, %s20
      %s23 = sphi 0, %s21
      %s35 = sphi 0, %s37
      %s38 = sphi 0, %s35
      %s39 = sphi 0, %s38
      %s55 = sphi 0, %s39
      %s63 = sphi 0, %s65
      %s66 = sphi 0, %s63
      %s67 = sphi 0, %s66
      %s83 = sphi 0, %s67
      %s87 = sphi 0, %s87
      %s89 = sphi 0, %s87
      %s90 = sphi 0, %s89
      %s104 = sphi 0, %s90
      %s110 = sphi 0, %s112
      %s113 = sphi 0, %s110
      %s114 = sphi 0, %s113
      %s130 = sphi 0, %s114
      %s136 = sphi 0, %s138
      %s139 = sphi 0, %s136
      %s140 = sphi 0, %s139
      %s156 = sphi 0, %s140
    $region4: #{downsampling_layer.2} parent=1 // loop_header_branch
      %14 = sbr.rel (%p12) target = $region8
    $region5: #{downsampling_layer.2} parent=1 // loop_body
      %s16 = ssub.s32 %s11, 1
      %s17 = ssub.s32 %s11, 2
      %s24 = sadd.s32 1, %s19
      %p25 = scmp.ge.s32.totalorder %s24, 1
      %s26 = scalar_select %p25, 0, %s24
      %s27 = sadd.s32 1, %s18
      %s28 = scalar_select %p25, %s27, %s18
      %p29 = scmp.ge.s32.totalorder %s28, 2
      %s30 = scalar_select %p29, 0, %s28
      %s31 = ssub.s32 %s18, %s30
      %s32 = ssub.s32 %s19, %s26
      %s33 = sor.u32 %s31, %s32
      %p34 = scmp.eq.s32.totalorder %s33, 0
      %s36 = sadd.s32 %s35, 1
      %s37 = scalar_select %p34, %s35, %s36
      %p40 = pneg %p34
      %p41 = scmp.eq.s32.totalorder %s11, 1
      %p42 = por %p40, %p41
      %p43 = scmp.ne.s32.totalorder %s35, %s38
      %p44 = scmp.eq.s32.totalorder %s11, 0
      %p45 = por %p43, %p44
      %p46 = scmp.ne.s32.totalorder %s35, %s38
      %p47 = scmp.eq.s32.totalorder %s16, 1
      %p48 = por %p46, %p47
      %p49 = scmp.ne.s32.totalorder %s38, %s39
      %p50 = scmp.eq.s32.totalorder %s16, 0
      %p51 = por %p49, %p50
      %p52 = scmp.ne.s32.totalorder %s38, %s39
      %p53 = scmp.eq.s32.totalorder %s17, 1
      %p54 = por %p52, %p53
      %p56 = scmp.ne.s32.totalorder %s39, %s55
      %p57 = scmp.eq.s32.totalorder %s17, 0
      %p58 = por %p56, %p57
      %s59 = ssub.s32 %s18, %s30
      %s60 = ssub.s32 %s19, %s26
      %s61 = sor.u32 %s59, %s60
      %p62 = scmp.eq.s32.totalorder %s61, 0
      %s64 = sadd.s32 %s63, 1
      %s65 = scalar_select %p62, %s63, %s64
      %p68 = pneg %p62
      %p69 = scmp.eq.s32.totalorder %s11, 1
      %p70 = por %p68, %p69
      %p71 = scmp.ne.s32.totalorder %s63, %s66
      %p72 = scmp.eq.s32.totalorder %s11, 0
      %p73 = por %p71, %p72
      %p74 = scmp.ne.s32.totalorder %s63, %s66
      %p75 = scmp.eq.s32.totalorder %s16, 1
      %p76 = por %p74, %p75
      %p77 = scmp.ne.s32.totalorder %s66, %s67
      %p78 = scmp.eq.s32.totalorder %s16, 0
      %p79 = por %p77, %p78
      %p80 = scmp.ne.s32.totalorder %s66, %s67
      %p81 = scmp.eq.s32.totalorder %s17, 1
      %p82 = por %p80, %p81
      %p84 = scmp.ne.s32.totalorder %s67, %s83
      %p85 = scmp.eq.s32.totalorder %s17, 0
      %p86 = por %p84, %p85
      %s88 = sadd.s32 %s87, 1
      %p91 = scmp.eq.s32.totalorder %s11, 1
      %p92 = scmp.ne.s32.totalorder %s87, %s89
      %p93 = scmp.eq.s32.totalorder %s11, 0
      %p94 = por %p92, %p93
      %p95 = scmp.ne.s32.totalorder %s87, %s89
      %p96 = scmp.eq.s32.totalorder %s16, 1
      %p97 = por %p95, %p96
      %p98 = scmp.ne.s32.totalorder %s89, %s90
      %p99 = scmp.eq.s32.totalorder %s16, 0
      %p100 = por %p98, %p99
      %p101 = scmp.ne.s32.totalorder %s89, %s90
      %p102 = scmp.eq.s32.totalorder %s17, 1
      %p103 = por %p101, %p102
      %p105 = scmp.ne.s32.totalorder %s90, %s104
      %p106 = scmp.eq.s32.totalorder %s17, 0
      %p107 = por %p105, %p106
      %s108 = ssub.s32 %s18, %s30
      %p109 = scmp.eq.s32.totalorder %s108, 0
      %s111 = sadd.s32 %s110, 1
      %s112 = scalar_select %p109, %s110, %s111
      %p115 = pneg %p109
      %p116 = scmp.eq.s32.totalorder %s11, 1
      %p117 = por %p115, %p116
      %p118 = scmp.ne.s32.totalorder %s110, %s113
      %p119 = scmp.eq.s32.totalorder %s11, 0
      %p120 = por %p118, %p119
      %p121 = scmp.ne.s32.totalorder %s110, %s113
      %p122 = scmp.eq.s32.totalorder %s16, 1
      %p123 = por %p121, %p122
      %p124 = scmp.ne.s32.totalorder %s113, %s114
      %p125 = scmp.eq.s32.totalorder %s16, 0
      %p126 = por %p124, %p125
      %p127 = scmp.ne.s32.totalorder %s113, %s114
      %p128 = scmp.eq.s32.totalorder %s17, 1
      %p129 = por %p127, %p128
      %p131 = scmp.ne.s32.totalorder %s114, %s130
      %p132 = scmp.eq.s32.totalorder %s17, 0
      %p133 = por %p131, %p132
      %s134 = ssub.s32 %s18, %s30
      %p135 = scmp.eq.s32.totalorder %s134, 0
      %s137 = sadd.s32 %s136, 1
      %s138 = scalar_select %p135, %s136, %s137
      %p141 = pneg %p135
      %p142 = scmp.eq.s32.totalorder %s11, 1
      %p143 = por %p141, %p142
      %p144 = scmp.ne.s32.totalorder %s136, %s139
      %p145 = scmp.eq.s32.totalorder %s11, 0
      %p146 = por %p144, %p145
      %p147 = scmp.ne.s32.totalorder %s136, %s139
      %p148 = scmp.eq.s32.totalorder %s16, 1
      %p149 = por %p147, %p148
      %p150 = scmp.ne.s32.totalorder %s139, %s140
      %p151 = scmp.eq.s32.totalorder %s16, 0
      %p152 = por %p150, %p151
      %p153 = scmp.ne.s32.totalorder %s139, %s140
      %p154 = scmp.eq.s32.totalorder %s17, 1
      %p155 = por %p153, %p154
      %p157 = scmp.ne.s32.totalorder %s140, %s156
      %p158 = scmp.eq.s32.totalorder %s17, 0
      %p159 = por %p157, %p158
      %p160 = scmp.le.s32.totalorder 1, %s11
      %p161 = scmp.lt.s32.totalorder %s11, 3
      %p162 = pnand %p160, %p161
      %p163 = pneg %p162
      // Predicated region
      $region9: #{downsampling_layer.2} parent=5 // pred_check
        _
      $region10: #{downsampling_layer.2} parent=5 // pred_check_branch
        %165 = sbr.rel (%p162) target = $region12
      $region11: #{downsampling_layer.2} parent=5 // pred_region
        %s166 = ssub.s32 %s11, 1
        // Predicated region
        $region13: #{downsampling_layer.2} parent=11 // pred_check
          %p167 = pneg %p100
        $region14: #{downsampling_layer.2} parent=11 // pred_check_branch
          %169 = sbr.rel (%p167) target = $region16
        $region15: #{downsampling_layer.2} parent=11 // pred_region
          _
        $region16: #{downsampling_layer.2} parent=11 // pred_fallthru
          _
      $region12: #{downsampling_layer.2} parent=5 // pred_fallthru
        _
      %p170 = scmp.lt.s32.totalorder %s11, 2
      // Predicated region
      $region17: #{downsampling_layer.2} parent=5 // pred_check
        %p171 = pneg %p170
      $region18: #{downsampling_layer.2} parent=5 // pred_check_branch
        %173 = sbr.rel (%p171) target = $region20
      $region19: #{downsampling_layer.2} parent=5 // pred_region
        // Predicated region
        $region21: #{downsampling_layer.2} parent=19 // pred_check
          %p174 = pneg %p45
        $region22: #{downsampling_layer.2} parent=19 // pred_check_branch
          %176 = sbr.rel (%p174) target = $region24
        $region23: #{downsampling_layer.2} parent=19 // pred_region
          %s177 = sand.u32 %s35, 1
          %s178 = sand.u32 %s35, 1
          %s179 = smul.addr %s178, 8
          %s180 = scalar_lea.vmem [#allocation2], %s179
          %s181 = smul.addr %s18, 4
          %s182 = sadd.s32 %s19, %s181
          %s183 = smul.addr %s182, 4
          %s184 = scalar_lea.vmem %s0, %s183
          // Predicated region
          $region25: #{downsampling_layer.2} parent=23 // pred_check
            _
          $region26: #{downsampling_layer.2} parent=23 // pred_check_branch
            %186 = sbr.rel (0) target = $region28
          $region27: #{downsampling_layer.2} parent=23 // pred_region
            // Predicated region
            $region29: #{downsampling_layer.2} parent=27 // pred_check
              _
            $region30: #{downsampling_layer.2} parent=27 // pred_check_branch
              %188 = sbr.rel target = $region32
            $region31: #{downsampling_layer.2} parent=27 // pred_region
              // Predicated region
              $region44: #{downsampling_layer.2} parent=31 // pred_check
                _
              $region45: #{downsampling_layer.2} parent=31 // pred_check_branch
                %206 = sbr.rel (0) target = $region47
              $region46: #{downsampling_layer.2} parent=31 // pred_region
                loop: start=0, step=1, limit=1
                $region48: #{downsampling_layer.2} parent=46 // loop_pre_header
                  _
                $region49: #{downsampling_layer.2} parent=46 // loop_header
                  %s208 = sphi 0, %s212
                  %p209 = scmp.ge.s32.totalorder %s208, 1
                  %s213 = sphi %s184, %s184
                  %s214 = sphi %s180, %s180
                $region50: #{downsampling_layer.2} parent=46 // loop_header_branch
                  %211 = sbr.rel (%p209) target = $region54
                $region51: #{downsampling_layer.2} parent=46 // loop_body
                  _
                $region52: #{downsampling_layer.2} parent=46 // loop_footer
                  %s212 = sadd.s32 1, %s208
                $region53: #{downsampling_layer.2} parent=46 // loop_footer_branch
                  %207 = sbr.rel target = $region49
                $region54: #{downsampling_layer.2} parent=46 // loop_exit
                  _
                %s216 = ssub.s32 16, 1
                loop: start=0, step=1, limit=1
                $region55: #{downsampling_layer.2} parent=46 // loop_pre_header
                  _
                $region56: #{downsampling_layer.2} parent=46 // loop_header
                  %s218 = sphi 0, %s222
                  %p219 = scmp.ge.s32.totalorder %s218, 1
                  %s223 = sphi %s184, %s184
                  %s224 = sphi %s180, %s180
                $region57: #{downsampling_layer.2} parent=46 // loop_header_branch
                  %221 = sbr.rel (%p219) target = $region61
                $region58: #{downsampling_layer.2} parent=46 // loop_body
                  %v225 = vld [vmem:[%s223] sm:%s216]
                  %226 = vst [vmem:[%s224] sm:%s216] %v225
                  %v227 = vld [vmem:[%s223 + $0x8] sm:%s216]
                  %228 = vst [vmem:[%s224 + $0x4] sm:%s216] %v227
                $region59: #{downsampling_layer.2} parent=46 // loop_footer
                  %s222 = sadd.s32 1, %s218
                $region60: #{downsampling_layer.2} parent=46 // loop_footer_branch
                  %217 = sbr.rel target = $region56
                $region61: #{downsampling_layer.2} parent=46 // loop_exit
                  _
              $region47: #{downsampling_layer.2} parent=31 // pred_fallthru
                _
            $region32: #{downsampling_layer.2} parent=27 // pred_fallthru
              _
            // Predicated region
            $region33: #{downsampling_layer.2} parent=27 // pred_check
              _
            $region34: #{downsampling_layer.2} parent=27 // pred_check_branch
              %190 = sbr.rel (0) target = $region36
            $region35: #{downsampling_layer.2} parent=27 // pred_region
              %s192 = ssub.s32 16, 1
              loop: start=0, step=1, limit=1
              $region37: #{downsampling_layer.2} parent=35 // loop_pre_header
                _
              $region38: #{downsampling_layer.2} parent=35 // loop_header
                %s194 = sphi 0, %s198
                %p195 = scmp.ge.s32.totalorder %s194, 1
                %s199 = sphi %s184, %s184
                %s200 = sphi %s180, %s180
              $region39: #{downsampling_layer.2} parent=35 // loop_header_branch
                %197 = sbr.rel (%p195) target = $region43
              $region40: #{downsampling_layer.2} parent=35 // loop_body
                %v201 = vld [vmem:[%s199] sm:%s192]
                %202 = vst [vmem:[%s200] sm:%s192] %v201
                %v203 = vld [vmem:[%s199 + $0x8] sm:%s192]
                %204 = vst [vmem:[%s200 + $0x4] sm:%s192] %v203
              $region41: #{downsampling_layer.2} parent=35 // loop_footer
                %s198 = sadd.s32 1, %s194
              $region42: #{downsampling_layer.2} parent=35 // loop_footer_branch
                %193 = sbr.rel target = $region38
              $region43: #{downsampling_layer.2} parent=35 // loop_exit
                _
            $region36: #{downsampling_layer.2} parent=27 // pred_fallthru
              _
          $region28: #{downsampling_layer.2} parent=23 // pred_fallthru
            _
          %229 = vnop
        $region24: #{downsampling_layer.2} parent=19 // pred_fallthru
          _
        // Predicated region
        $region62: #{downsampling_layer.2} parent=19 // pred_check
          %p230 = pneg %p73
        $region63: #{downsampling_layer.2} parent=19 // pred_check_branch
          %232 = sbr.rel (%p230) target = $region65
        $region64: #{downsampling_layer.2} parent=19 // pred_region
          %p233 = scmp.lt.s32.totalorder %s18, 1
          %s234 = scalar_select %p233, %s18, 1
          %p235 = scmp.lt.s32.totalorder %s19, 0
          %s236 = scalar_select %p235, %s19, 0
          %s237 = smul.addr %s236, 2
          %s238 = smul.addr %s234, 2
          %s239 = sadd.s32 %s237, %s238
          %s240 = smul.addr %s239, 4
          %s241 = scalar_lea.vmem %s1, %s240
        $region65: #{downsampling_layer.2} parent=19 // pred_fallthru
          _
      $region20: #{downsampling_layer.2} parent=5 // pred_fallthru
        _
      %p242 = scmp.le.s32.totalorder 1, %s11
      %p243 = scmp.lt.s32.totalorder %s11, 3
      %p244 = pnand %p242, %p243
      %p245 = pneg %p244
      // Predicated region
      $region66: #{downsampling_layer.2} parent=5 // pred_check
        _
      $region67: #{downsampling_layer.2} parent=5 // pred_check_branch
        %247 = sbr.rel (%p244) target = $region69
      $region68: #{downsampling_layer.2} parent=5 // pred_region
        %s248 = ssub.s32 %s11, 1
        %s249 = sand.u32 %s38, 1
        %s250 = sand.u32 %s38, 1
        %s251 = smul.addr %s250, 8
        %s252 = scalar_lea.vmem [#allocation2], %s251
        // Predicated region
        $region70: #{downsampling_layer.2} parent=68 // pred_check
          %p253 = pneg %p51
        $region71: #{downsampling_layer.2} parent=68 // pred_check_branch
          %255 = sbr.rel (%p253) target = $region73
        $region72: #{downsampling_layer.2} parent=68 // pred_region
          _
        $region73: #{downsampling_layer.2} parent=68 // pred_fallthru
          _
        %s256 = sand.u32 %s38, 1
        %s257 = sand.u32 %s38, 1
        %s258 = smul.addr %s257, 8
        %s259 = scalar_lea.vmem [#allocation2], %s258
        %p260 = pneg %p51
        %p261 = pneg %p48
        %p262 = scmp.lt.s32.totalorder %s20, 1
        %s263 = scalar_select %p262, %s20, 1
        %p264 = scmp.lt.s32.totalorder %s21, 0
        %s265 = scalar_select %p264, %s21, 0
        %s266 = smul.addr %s265, 2
        %s267 = smul.addr %s263, 2
        %s268 = sadd.s32 %s266, %s267
        %s269 = smul.addr %s268, 4
        %s270 = scalar_lea.vmem %s1, %s269
        %p271 = pneg %p79
        %p272 = pneg %p76
        %p273 = pneg %p100
        %p274 = pneg %p97
        %p275 = pneg %p126
        %p276 = pneg %p123
        %p277 = scmp.lt.s32.totalorder %s20, 1
        %s278 = scalar_select %p277, %s20, 1
        %s279 = smul.addr %s278, 8
        %s280 = scalar_lea.vmem %s3, %s279
        %p281 = pneg %p152
        %p282 = pneg %p149
        %p283 = scmp.lt.s32.totalorder %s20, 1
        %s284 = scalar_select %p283, %s20, 1
        %s285 = smul.addr %s284, 8
        %s286 = scalar_lea.vmem %s4, %s285
        %p287 = scmp.lt.s32.totalorder %s20, 1
        %s288 = scalar_select %p287, %s20, 1
        %p289 = scmp.lt.s32.totalorder %s21, 0
        %s290 = scalar_select %p289, %s21, 0
        %s291 = smul.addr %s290, 2
        %s292 = smul.addr %s288, 2
        %s293 = sadd.s32 %s291, %s292
        %s294 = smul.addr %s293, 4
        %s295 = scalar_lea.vmem %s1, %s294
        %p296 = scmp.lt.s32.totalorder %s20, 1
        %s297 = scalar_select %p296, %s20, 1
        %s298 = smul.addr %s297, 8
        %s299 = scalar_lea.vmem %s3, %s298
        %p300 = scmp.lt.s32.totalorder %s20, 1
        %s301 = scalar_select %p300, %s20, 1
        %s302 = smul.addr %s301, 8
        %s303 = scalar_lea.vmem %s4, %s302
        %p305 = scmp.eq.s32.totalorder %s21, 0
        // Predicated region
        $region74: #{downsampling_layer.2} parent=68 // pred_check
          %p306 = pneg %p305
        $region75: #{downsampling_layer.2} parent=68 // pred_check_branch
          %308 = sbr.rel (%p306) target = $region77
        $region76: #{downsampling_layer.2} parent=68 // pred_region
          %vm309 = vcmask 7168
          %310 = vst.msk [vmem:[%s299] sm:$0xff] %vm309, 0.0
          %311 = vst.msk [vmem:[%s303] sm:$0xff] %vm309, 0.0
        $region77: #{downsampling_layer.2} parent=68 // pred_fallthru
          _
        %v312 = vld [vmem:[%s252] sm:$0xf]
        %v313 = vld [vmem:[%s252 + $0x4] sm:$0xf]
        %v314 = vld [vmem:[%s295] sm:$0xf]
        %v315 = vld [vmem:[%s295 + $0x4] sm:$0xf]
        %v318 = vunpack.c.l.b16 %v312
        %v319 = vunpack.c.l.b16 %v313
        %v320 = vpack.c.b16 %v319, %v318
        %v324 = vunpack.c.l.b16 %v314
        %v325 = vunpack.c.l.b16 %v315
        %v326 = vpack.c.b16 %v325, %v324
        %327 = vrot.lane.b32.xlu0 %v320, 127
        %v328 = vpop.permute.xlu0 %327
        %329 = vrot.lane.b32.xlu0 %v326, 127
        %v330 = vpop.permute.xlu0 %329
        %vm331 = vcmask 1039360
        %v332 = vsel %vm331, %v328, %v330
        %334 = vrot.lane.b32.xlu0 %v320, 126
        %v335 = vpop.permute.xlu0 %334
        %336 = vrot.lane.b32.xlu0 %v326, 126
        %v337 = vpop.permute.xlu0 %336
        %vm338 = vcmask 1031168
        %v339 = vsel %vm338, %v335, %v337
        %341 = vrot.lane.b32.xlu0 %v320, 125
        %v342 = vpop.permute.xlu0 %341
        %343 = vrot.lane.b32.xlu0 %v326, 125
        %v344 = vpop.permute.xlu0 %343
        %vm345 = vcmask 1022976
        %v346 = vsel %vm345, %v342, %v344
        %348 = vrot.lane.b32.xlu0 %v320, 124
        %v349 = vpop.permute.xlu0 %348
        %350 = vrot.lane.b32.xlu0 %v326, 124
        %v351 = vpop.permute.xlu0 %350
        %vm352 = vcmask 1014784
        %v353 = vsel %vm352, %v349, %v351
        %355 = vrot.lane.b32.xlu0 %v320, 123
        %v356 = vpop.permute.xlu0 %355
        %357 = vrot.lane.b32.xlu0 %v326, 123
        %v358 = vpop.permute.xlu0 %357
        %vm359 = vcmask 1006592
        %v360 = vsel %vm359, %v356, %v358
        %362 = vrot.lane.b32.xlu0 %v320, 122
        %v363 = vpop.permute.xlu0 %362
        %364 = vrot.lane.b32.xlu0 %v326, 122
        %v365 = vpop.permute.xlu0 %364
        %vm366 = vcmask 998400
        %v367 = vsel %vm366, %v363, %v365
        %369 = vrot.lane.b32.xlu0 %v320, 121
        %v370 = vpop.permute.xlu0 %369
        %371 = vrot.lane.b32.xlu0 %v326, 121
        %v372 = vpop.permute.xlu0 %371
        %vm373 = vcmask 990208
        %v374 = vsel %vm373, %v370, %v372
        %376 = vrot.lane.b32.xlu0 %v320, 120
        %v377 = vpop.permute.xlu0 %376
        %378 = vrot.lane.b32.xlu0 %v326, 120
        %v379 = vpop.permute.xlu0 %378
        %vm380 = vcmask 982016
        %v381 = vsel %vm380, %v377, %v379
        %383 = vrot.lane.b32.xlu0 %v320, 119
        %v384 = vpop.permute.xlu0 %383
        %385 = vrot.lane.b32.xlu0 %v326, 119
        %v386 = vpop.permute.xlu0 %385
        %vm387 = vcmask 973824
        %v388 = vsel %vm387, %v384, %v386
        %390 = vrot.lane.b32.xlu0 %v320, 118
        %v391 = vpop.permute.xlu0 %390
        %392 = vrot.lane.b32.xlu0 %v326, 118
        %v393 = vpop.permute.xlu0 %392
        %vm394 = vcmask 965632
        %v395 = vsel %vm394, %v391, %v393
        %397 = vrot.lane.b32.xlu0 %v320, 117
        %v398 = vpop.permute.xlu0 %397
        %399 = vrot.lane.b32.xlu0 %v326, 117
        %v400 = vpop.permute.xlu0 %399
        %vm401 = vcmask 957440
        %v402 = vsel %vm401, %v398, %v400
        %404 = vrot.lane.b32.xlu0 %v320, 116
        %v405 = vpop.permute.xlu0 %404
        %406 = vrot.lane.b32.xlu0 %v326, 116
        %v407 = vpop.permute.xlu0 %406
        %vm408 = vcmask 949248
        %v409 = vsel %vm408, %v405, %v407
        %411 = vrot.lane.b32.xlu0 %v320, 115
        %v412 = vpop.permute.xlu0 %411
        %413 = vrot.lane.b32.xlu0 %v326, 115
        %v414 = vpop.permute.xlu0 %413
        %vm415 = vcmask 941056
        %v416 = vsel %vm415, %v412, %v414
        %418 = vrot.lane.b32.xlu0 %v320, 114
        %v419 = vpop.permute.xlu0 %418
        %420 = vrot.lane.b32.xlu0 %v326, 114
        %v421 = vpop.permute.xlu0 %420
        %vm422 = vcmask 932864
        %v423 = vsel %vm422, %v419, %v421
        %v425 = vld [vmem:[%s2] sm:$0xff]
        %v427 = vunpack.c.l.b16 %v425
        %v428 = vunpack.c.h.b16 %v425
        %v429 = vpack.c.b16 %v427, %v427
        %v430 = vpack.c.b16 %v428, %v428
        %vm432 = vcmask 916480
        %v434 = vsel %vm432, %v430, 0
        %436 = vmatpush.bf16.msra.mxu0 %v374
        %437 = vmatpush.bf16.msra.mxu0 %v367
        %438 = vmatpush.bf16.msra.mxu0 %v360
        %439 = vmatpush.bf16.msra.mxu0 %v353
        %440 = vmatpush.bf16.msra.mxu0 %v346
        %441 = vmatpush.bf16.msra.mxu0 %v339
        %442 = vmatpush.bf16.msra.mxu0 %v332
        %443 = vmatpush.bf16.msra.mxu0 %v320
        %444 = vmatmul.bf16.gmra.mxu0 %v429
        %v445 = vpop.f32.mrf.mxu0
        %v446 = vadd.f32 0.0, %v445
        %v447 = vpop.f32.mrf.mxu0
        %448 = vdwg.mxu0
        %449 = vmatpush.bf16.msra.mxu0 0
        %450 = vmatpush.bf16.msra.mxu0 %v423
        %451 = vmatpush.bf16.msra.mxu0 %v416
        %452 = vmatpush.bf16.msra.mxu0 %v409
        %453 = vmatpush.bf16.msra.mxu0 %v402
        %454 = vmatpush.bf16.msra.mxu0 %v395
        %455 = vmatpush.bf16.msra.mxu0 %v388
        %456 = vmatpush.bf16.msra.mxu0 %v381
        %457 = vmatmul.bf16.gmra.mxu0 %v434
        %v458 = vpop.f32.mrf.mxu0
        %v459 = vadd.f32 %v446, %v458
        %v460 = vpop.f32.mrf.mxu0
        %461 = vdwg.mxu0
        %s462 = smul.u32 %s21, 128
        %v463 = vlaneseq
        %v464 = vand.u32 %v463, 127
        %v465 = vstv %s462
        %v466 = vadd.s32 %v465, %v464
        %vm467 = vcmp.lt.s32.totalorder %v466, 16
        %v468 = vsel %vm467, 1, 0
        %vm469 = vcmp.eq.s32.totalorder %v468, 1
        %v470 = vsel %vm469, %v459, 0.0
        %v471 = vld [vmem:[%s299] sm:$0xff]
        %472 = vadd.xlane.f32.xlu0 %v470
        %v473 = vpop.xlane.xlu0 %472
        %v474 = vadd.f32 %v471, %v473
        %vm475 = vcmask 7168
        %476 = vst.msk [vmem:[%s299] sm:$0xff] %vm475, %v474
        %v477 = vld [vmem:[%s303] sm:$0xff]
        %v478 = vmul.f32 %v470, %v470
        %479 = vadd.xlane.f32.xlu0 %v478
        %v480 = vpop.xlane.xlu0 %479
        %v481 = vadd.f32 %v477, %v480
        %482 = vst.msk [vmem:[%s303] sm:$0xff] %vm475, %v481
        %p483 = scmp.lt.s32.totalorder %s20, 1
        %s484 = scalar_select %p483, %s20, 1
        %s485 = smul.addr %s484, 8
        %s486 = scalar_lea.vmem %s3, %s485
        %p487 = scmp.lt.s32.totalorder %s20, 1
        %s488 = scalar_select %p487, %s20, 1
        %s489 = smul.addr %s488, 8
        %s490 = scalar_lea.vmem %s4, %s489
        // Predicated region
        $region78: #{downsampling_layer.2} parent=68 // pred_check
          %p491 = pneg %p123
        $region79: #{downsampling_layer.2} parent=68 // pred_check_branch
          %493 = sbr.rel (%p491) target = $region81
        $region80: #{downsampling_layer.2} parent=68 // pred_region
          _
        $region81: #{downsampling_layer.2} parent=68 // pred_fallthru
          _
        // Predicated region
        $region82: #{downsampling_layer.2} parent=68 // pred_check
          %p494 = pneg %p149
        $region83: #{downsampling_layer.2} parent=68 // pred_check_branch
          %496 = sbr.rel (%p494) target = $region85
        $region84: #{downsampling_layer.2} parent=68 // pred_region
          _
        $region85: #{downsampling_layer.2} parent=68 // pred_fallthru
          _
      $region69: #{downsampling_layer.2} parent=5 // pred_fallthru
        _
      %p497 = scmp.le.s32.totalorder 2, %s11
      // Predicated region
      $region86: #{downsampling_layer.2} parent=5 // pred_check
        %p498 = pneg %p497
      $region87: #{downsampling_layer.2} parent=5 // pred_check_branch
        %500 = sbr.rel (%p498) target = $region89
      $region88: #{downsampling_layer.2} parent=5 // pred_region
        %s501 = ssub.s32 %s11, 2
        // Predicated region
        $region90: #{downsampling_layer.2} parent=88 // pred_check
          %p502 = pneg %p129
        $region91: #{downsampling_layer.2} parent=88 // pred_check_branch
          %504 = sbr.rel (%p502) target = $region93
        $region92: #{downsampling_layer.2} parent=88 // pred_region
          %p505 = scmp.lt.s32.totalorder %s22, 1
          %s506 = scalar_select %p505, %s22, 1
          %s507 = smul.addr %s506, 8
          %s508 = scalar_lea.vmem %s3, %s507
        $region93: #{downsampling_layer.2} parent=88 // pred_fallthru
          _
        // Predicated region
        $region94: #{downsampling_layer.2} parent=88 // pred_check
          %p509 = pneg %p155
        $region95: #{downsampling_layer.2} parent=88 // pred_check_branch
          %511 = sbr.rel (%p509) target = $region97
        $region96: #{downsampling_layer.2} parent=88 // pred_region
          %p512 = scmp.lt.s32.totalorder %s22, 1
          %s513 = scalar_select %p512, %s22, 1
          %s514 = smul.addr %s513, 8
          %s515 = scalar_lea.vmem %s4, %s514
        $region97: #{downsampling_layer.2} parent=88 // pred_fallthru
          _
      $region89: #{downsampling_layer.2} parent=5 // pred_fallthru
        _
    $region6: #{downsampling_layer.2} parent=1 // loop_footer
      %s15 = sadd.s32 1, %s11
    $region7: #{downsampling_layer.2} parent=1 // loop_footer_branch
      %10 = sbr.rel target = $region3
    $region8: #{downsampling_layer.2} parent=1 // loop_exit
      _

</llo_original>
